<compile_context>
chip_gen: v7x
topology: tpu7x:2x2x1
jax: 0.10.0
libtpu: 0.0.40
codegen_flags: <defaults>
</compile_context>

<pallas_src>
import functools

import jax
import jax.numpy as jnp
import numpy as np
from jax import lax
from jax.experimental import pallas as pl
from jax.experimental.pallas import tpu as pltpu

EPS = 1e-5
SLOPE = 0.1  # LeakyReLU negative slope


def _round_up(a, m):
    return (a + m - 1) // m * m


def _leaky(z):
    return jnp.where(z > 0, z, SLOPE * z)


# --------------------------- in-kernel helpers --------------------------------
def _fill_padded(xp_ref, z_hwc, H, W):
    """Write an activation into the interior of the per-image padded scratch.

    Only the four 1-pixel halo strips are zeroed (re-zeroed every grid step so
    the kernel is correct under megacore sharding); columns >= W+2 of the
    sublane-rounded scratch are never read by any tap and are left untouched.
    """
    cdt = xp_ref.dtype
    Wp = xp_ref.shape[1]
    C = xp_ref.shape[2]
    zrow = jnp.zeros((1, Wp, C), cdt)
    zcol = jnp.zeros((H + 2, 1, C), cdt)
    xp_ref[0:1, :, :] = zrow                       # top halo row
    xp_ref[H + 1:H + 2, :, :] = zrow               # bottom halo row
    xp_ref[:, 0:1, :] = zcol                       # left halo column
    xp_ref[:, W + 1:W + 2, :] = zcol               # right halo column
    xp_ref[1:H + 1, 1:W + 1, :] = z_hwc.astype(cdt)


def _conv3x3(xp_ref, w_ref, H, W, C):
    """3x3 'same' conv of the padded scratch as 3 accumulating K=3*C matmuls.

    Taps are sliced directly from the scratch ref (static windows, no whole
    padded-array load); the three kx taps of one ky row-group are concatenated
    on the contraction axis so each MXU matmul keeps depth 3*C, with f32
    accumulation.  No (rows, 9*C) im2col buffer is materialized.
    """
    HW = H * W
    acc = None
    for ky in range(3):
        lhs = jnp.concatenate(
            [xp_ref[ky:ky + H, kx:kx + W, :] for kx in range(3)],
            axis=-1).reshape(HW, 3 * C)
        part = jnp.dot(lhs, w_ref[ky * 3 * C:(ky + 1) * 3 * C, :],
                       preferred_element_type=jnp.float32)
        acc = part if acc is None else acc + part
    return acc                                     # (HW, C) f32


def _channel_stats(acc):
    """Per-channel (sum, sum-of-squares) via ones-row MXU matmuls; the MXU is
    otherwise idle during this phase so it is free-slot filler."""
    ones = jnp.ones((1, acc.shape[0]), jnp.float32)
    s1 = jnp.dot(ones, acc, preferred_element_type=jnp.float32)
    s2 = jnp.dot(ones, acc * acc, preferred_element_type=jnp.float32)
    return jnp.concatenate([s1, s2], axis=0)       # (2, C)


# ------------------------------- kernels --------------------------------------
def _conv_stats_kernel(x_ref, w_ref, y_ref, ps_ref, xp_ref, *, H, W, C):
    """Stage 1: conv1 of one image + per-image partial BN statistics."""
    _fill_padded(xp_ref, x_ref[0].reshape(H, W, C), H, W)
    acc = _conv3x3(xp_ref, w_ref, H, W, C)
    y_ref[0] = acc
    ps_ref[0] = _channel_stats(acc)


def _bn_act_conv_stats_kernel(y_in_ref, scale_ref, shift_ref, w_ref,
                              y_ref, ps_ref, xp_ref, *, H, W, C):
    """Stages 2/3: folded-BN + LeakyReLU of the previous layer's raw conv
    output, fused into the next conv + its partial BN statistics."""
    z = _leaky(y_in_ref[0] * scale_ref[...] + shift_ref[...])
    _fill_padded(xp_ref, z.reshape(H, W, C), H, W)
    acc = _conv3x3(xp_ref, w_ref, H, W, C)
    y_ref[0] = acc
    ps_ref[0] = _channel_stats(acc)


def _bn_residual_pool_kernel(y_in_ref, scale_ref, shift_ref, x_ref, out_ref,
                             *, H, W, C, s):
    """Stage 4: BN3 + residual add + LeakyReLU + MaxPool2d(s, s)."""
    z = y_in_ref[0] * scale_ref[...] + shift_ref[...]
    y = _leaky(z + x_ref[0].astype(jnp.float32))             # (H*W, C) f32
    if s > 1:
        Ho, Wo = H // s, W // s
        # TODO(synk): pairwise strided maxima would avoid the tiny size-s
        #             sublane axis; keep reshape+max (proven lowering) for now.
        y = jnp.max(y.reshape(H, Wo, s, C), axis=2)          # pool width
        y = jnp.max(y.reshape(Ho, s, Wo, C), axis=1)         # pool height
        y = y.reshape(Ho * Wo, C)
    out_ref[0] = y.astype(out_ref.dtype)


# ------------------------------- wrapper ---------------------------------------
def _fold_bn(ps, gamma, beta, count):
    """Tiny cross-image reduction of per-image (sum, sumsq) partials and fold
    of gamma and 1/std into a single per-channel scale & shift (plain JAX)."""
    tot = jnp.sum(ps, axis=0)                      # (2, C)
    mean = tot[0] / count
    var = tot[1] / count - mean * mean             # biased var (BatchNorm2d fwd)
    # TODO(synk): compensated / two-pass variance for very large N*H*W where
    #             E[x^2] - E[x]^2 cancellation could matter.
    inv = lax.rsqrt(var + EPS)
    scale = gamma.reshape(-1) * inv
    shift = beta.reshape(-1) - mean * scale
    return (scale.reshape(1, -1).astype(jnp.float32),
            shift.reshape(1, -1).astype(jnp.float32))


def basic_block_forward_nhwc(x_nhwc, params, *, stride,
                             compute_dtype=jnp.bfloat16):
    """NHWC-native BasicBlock forward (no layout transposes anywhere)."""
    N, H, W, C = x_nhwc.shape
    assert params["w1"].shape[2] == C and params["w1"].shape[3] == C, \
        "residual add requires inplanes == planes (downsample=None)"
    assert H % stride == 0 and W % stride == 0
    HW = H * W
    Ho, Wo = H // stride, W // stride
    Wp = _round_up(W + 2, 8)                       # sublane-aligned scratch width

    x2 = x_nhwc.astype(jnp.float32).reshape(N, HW, C)

    def wmat(w):  # HWIO (3,3,Cin,Cout) -> im2col matrix (9*Cin, Cout)
        return w.reshape(9 * C, C).astype(compute_dtype)

    w1, w2, w3 = wmat(params["w1"]), wmat(params["w2"]), wmat(params["w3"])

    # VMEM budget: per-step working set with pipeline headroom, capped at 75%
    # of this generation's physical VMEM (v7x 64 MiB -> 48 MiB cap, v5e/v6e
    # 128 MiB -> 96 MiB cap).
    itemsize = jnp.dtype(compute_dtype).itemsize
    step_bytes = (2 * 2 * HW * C * 4               # double-buffered in/out blocks
                  + (H + 2) * Wp * C * itemsize    # padded scratch
                  + HW * C * 4                     # f32 conv accumulator
                  + HW * 3 * C * itemsize          # one K=3C tap-group LHS
                  + 9 * C * C * itemsize           # conv weights
                  + 4 * HW * C * 4)                # elementwise temporaries
    try:
        vmem_cap = int(pltpu.get_tpu_info().vmem_capacity_bytes)
    except Exception:                              # fallback: v7x physical ceiling
        vmem_cap = 64 * 1024 * 1024
    vmem_limit = int(min(max(2 * step_bytes, 32 * 1024 * 1024),
                         (vmem_cap * 3) // 4))
    cparams = pltpu.CompilerParams(
        dimension_semantics=("parallel",),         # megacore: images shard on TCs
        vmem_limit_bytes=vmem_limit)

    # One image per grid step (double-buffered); weights and the folded
    # per-channel scale/shift use constant index maps so they stay resident.
    blk_img = pl.BlockSpec((1, HW, C), lambda n: (n, 0, 0))
    blk_ps = pl.BlockSpec((1, 2, C), lambda n: (n, 0, 0))
    spec_w = pl.BlockSpec((9 * C, C), lambda n: (0, 0))
    spec_c = pl.BlockSpec((1, C), lambda n: (0, 0))
    scratch = [pltpu.VMEM((H + 2, Wp, C), compute_dtype)]

    conv_cost = pl.CostEstimate(
        flops=N * (2 * HW * 9 * C * C + 4 * HW * C),
        transcendentals=0,
        bytes_accessed=N * (2 * HW * C * 4 + 2 * C * 4) + 3 * 9 * C * C * itemsize)

    # ---- stage 1: conv1 + per-image partial BN statistics -------------------
    y1, ps1 = pl.pallas_call(
        functools.partial(_conv_stats_kernel, H=H, W=W, C=C),
        grid=(N,),
        in_specs=[blk_img, spec_w],
        out_specs=[blk_img, blk_ps],
        out_shape=[jax.ShapeDtypeStruct((N, HW, C), jnp.float32),
                   jax.ShapeDtypeStruct((N, 2, C), jnp.float32)],
        scratch_shapes=scratch,
        compiler_params=cparams,
        cost_estimate=conv_cost,
    )(x2, w1)
    sc1, sh1 = _fold_bn(ps1, params["g1"], params["b1"], N * HW)

    # ---- stages 2/3: bn+act of layer k fused into conv of layer k+1 ----------
    def bn_act_conv(y_prev, sc, sh, w):
        return pl.pallas_call(
            functools.partial(_bn_act_conv_stats_kernel, H=H, W=W, C=C),
            grid=(N,),
            in_specs=[blk_img, spec_c, spec_c, spec_w],
            out_specs=[blk_img, blk_ps],
            out_shape=[jax.ShapeDtypeStruct((N, HW, C), jnp.float32),
                       jax.ShapeDtypeStruct((N, 2, C), jnp.float32)],
            scratch_shapes=scratch,
            compiler_params=cparams,
            cost_estimate=conv_cost,
        )(y_prev, sc, sh, w)

    y2, ps2 = bn_act_conv(y1, sc1, sh1, w2)
    sc2, sh2 = _fold_bn(ps2, params["g2"], params["b2"], N * HW)
    y3, ps3 = bn_act_conv(y2, sc2, sh2, w3)
    sc3, sh3 = _fold_bn(ps3, params["g3"], params["b3"], N * HW)

    # ---- stage 4: bn3 + residual + LeakyReLU + maxpool ------------------------
    out = pl.pallas_call(
        functools.partial(_bn_residual_pool_kernel, H=H, W=W, C=C, s=stride),
        grid=(N,),
        in_specs=[blk_img, spec_c, spec_c, blk_img],
        out_specs=pl.BlockSpec((1, Ho * Wo, C), lambda n: (n, 0, 0)),
        out_shape=jax.ShapeDtypeStruct((N, Ho * Wo, C), x_nhwc.dtype),
        compiler_params=cparams,
        cost_estimate=pl.CostEstimate(flops=N * HW * C * 8, transcendentals=0,
                                      bytes_accessed=N * HW * C * 8),
    )(y3, sc3, sh3, x2)
    # TODO(synk): for C < 128, a lane-dense out_spec (fold Wo into lanes) would
    #             avoid masked partial stores on the pooled output.
    return out.reshape(N, Ho, Wo, C)


def basic_block_forward(x_nchw, params, *, stride, compute_dtype=jnp.bfloat16):
    """PyTorch-layout (NCHW) entry point; layout transposes live only here."""
    x_nhwc = jnp.transpose(x_nchw, (0, 2, 3, 1))
    out = basic_block_forward_nhwc(x_nhwc, params, stride=stride,
                                   compute_dtype=compute_dtype)
    return jnp.transpose(out, (0, 3, 1, 2))


# ---------------- pure-JAX reference (correctness check) -----------------------
def _ref_forward(x_nchw, params, *, stride, compute_dtype=None):
    """f32 reference.  If compute_dtype is given, conv inputs/weights are
    rounded through it first (mirrors the kernel's bf16-input MXU matmuls)."""
    x = jnp.transpose(x_nchw, (0, 2, 3, 1)).astype(jnp.float32)

    def cast(a):
        if compute_dtype is None:
            return a.astype(jnp.float32)
        return a.astype(compute_dtype).astype(jnp.float32)

    def conv(inp, w):
        return lax.conv_general_dilated(
            cast(inp), cast(w), window_strides=(1, 1), padding=((1, 1), (1, 1)),
            dimension_numbers=("NHWC", "HWIO", "NHWC"))

    def bn(y, g, b):
        mean = jnp.mean(y, axis=(0, 1, 2), keepdims=True)
        var = jnp.mean((y - mean) ** 2, axis=(0, 1, 2), keepdims=True)
        return (y - mean) * lax.rsqrt(var + EPS) * g + b

    def lrelu(y):
        return jnp.where(y > 0, y, SLOPE * y)

    h = lrelu(bn(conv(x, params["w1"]), params["g1"], params["b1"]))
    h = lrelu(bn(conv(h, params["w2"]), params["g2"], params["b2"]))
    h = bn(conv(h, params["w3"]), params["g3"], params["b3"])
    h = lrelu(h + x)
    if stride > 1:
        h = lax.reduce_window(h, -jnp.inf, lax.max,
                              (1, stride, stride, 1), (1, stride, stride, 1),
                              "VALID")
    return jnp.transpose(h, (0, 3, 1, 2))


if __name__ == "__main__":
    # Small shapes: batch=2, inplanes=planes=4, spatial=16, stride=2.
    N, C, H, W = 2, 4, 16, 16
    stride = 2

    key = jax.random.PRNGKey(0)
    kx, k1, k2, k3, kg1, kb1, kg2, kb2, kg3, kb3 = jax.random.split(key, 10)

    x = jax.random.normal(kx, (N, C, H, W), jnp.float32)

    # Conv weights stored in HWIO (kh, kw, Cin, Cout); BN affine params (1, C).
    params = {
        "w1": 0.1 * jax.random.normal(k1, (3, 3, C, C), jnp.float32),
        "w2": 0.1 * jax.random.normal(k2, (3, 3, C, C), jnp.float32),
        "w3": 0.1 * jax.random.normal(k3, (3, 3, C, C), jnp.float32),
        "g1": 1.0 + 0.1 * jax.random.normal(kg1, (1, C), jnp.float32),
        "b1": 0.1 * jax.random.normal(kb1, (1, C), jnp.float32),
        "g2": 1.0 + 0.1 * jax.random.normal(kg2, (1, C), jnp.float32),
        "b2": 0.1 * jax.random.normal(kb2, (1, C), jnp.float32),
        "g3": 1.0 + 0.1 * jax.random.normal(kg3, (1, C), jnp.float32),
        "b3": 0.1 * jax.random.normal(kb3, (1, C), jnp.float32),
    }

    # 1) Exact-semantics path (f32 MXU matmuls) vs f32 reference, tight tol.
    out_f32 = jax.block_until_ready(
        basic_block_forward(x, params, stride=stride,
                            compute_dtype=jnp.float32))
    ref_f32 = jax.block_until_ready(_ref_forward(x, params, stride=stride))
    np.testing.assert_allclose(np.asarray(out_f32), np.asarray(ref_f32),
                               rtol=1e-4, atol=1e-4)

    # 2) Fast path: bf16 MXU inputs (f32 accumulation / BN / residual),
    #    checked against a reference with identically bf16-rounded conv inputs.
    out_bf16 = jax.block_until_ready(
        basic_block_forward(x, params, stride=stride,
                            compute_dtype=jnp.bfloat16))
    ref_bf16 = jax.block_until_ready(
        _ref_forward(x, params, stride=stride, compute_dtype=jnp.bfloat16))
    np.testing.assert_allclose(np.asarray(out_bf16), np.asarray(ref_bf16),
                               rtol=2e-2, atol=2e-2)

    assert out_bf16.shape == (N, C, H // stride, W // stride)
    print("KERNEL_OK")
</pallas_src>

<mosaic_0001>
module attributes {stable_mosaic.version = 11 : i64} {
  func.func @_conv_stats_kernel(%arg0: i32, %arg1: memref<1x256x4xf32, #tpu.memory_space<vmem>>, %arg2: memref<36x4xf32, #tpu.memory_space<vmem>>, %arg3: memref<1x256x4xf32, #tpu.memory_space<vmem>>, %arg4: memref<1x2x4xf32, #tpu.memory_space<vmem>>, %arg5: memref<18x24x4xf32, #tpu.memory_space<vmem>>) attributes {dimension_semantics = [#tpu.dimension_semantics<parallel>], iteration_bounds = array<i64: 2>, scalar_prefetch = 0 : i64, scratch_operands = 1 : i64, tpu.core_type = #tpu.core_type<tc>, window_params = [{transform_indices = @transform_0, window_bounds = array<i64: 1, 256, 4>}, {pipeline_mode = #tpu.pipeline_mode<synchronous>, transform_indices = @transform_1, window_bounds = array<i64: 36, 4>}, {transform_indices = @transform_2, window_bounds = array<i64: 1, 256, 4>}, {transform_indices = @transform_3, window_bounds = array<i64: 1, 2, 4>}]} {
    %c0 = arith.constant 0 : index
    %c0_0 = arith.constant 0 : index
    %c0_1 = arith.constant 0 : index
    %0 = vector.load %arg1[%c0, %c0_0, %c0_1] : memref<1x256x4xf32, #tpu.memory_space<vmem>>, vector<1x256x4xf32>
    %1 = vector.shape_cast %0 : vector<1x256x4xf32> to vector<256x4xf32>
    %2 = vector.shape_cast %1 : vector<256x4xf32> to vector<16x16x4xf32>
    %cst = arith.constant 0.000000e+00 : f32
    %3 = vector.broadcast %cst : f32 to vector<1x24x4xf32>
    %cst_2 = arith.constant 0.000000e+00 : f32
    %4 = vector.broadcast %cst_2 : f32 to vector<18x1x4xf32>
    %c0_3 = arith.constant 0 : index
    %c0_4 = arith.constant 0 : index
    %c0_5 = arith.constant 0 : index
    %5 = vector.load %arg5[%c0_3, %c0_4, %c0_5] : memref<18x24x4xf32, #tpu.memory_space<vmem>>, vector<1x24x4xf32>
    tpu.vector_store %arg5[%c0_3, %c0_4, %c0_5], %3 {strides = array<i32>} : memref<18x24x4xf32, #tpu.memory_space<vmem>>, vector<1x24x4xf32>,
    %c17 = arith.constant 17 : index
    %c0_6 = arith.constant 0 : index
    %c0_7 = arith.constant 0 : index
    %6 = vector.load %arg5[%c17, %c0_6, %c0_7] : memref<18x24x4xf32, #tpu.memory_space<vmem>>, vector<1x24x4xf32>
    tpu.vector_store %arg5[%c17, %c0_6, %c0_7], %3 {strides = array<i32>} : memref<18x24x4xf32, #tpu.memory_space<vmem>>, vector<1x24x4xf32>,
    %c0_8 = arith.constant 0 : index
    %c0_9 = arith.constant 0 : index
    %c0_10 = arith.constant 0 : index
    %7 = vector.load %arg5[%c0_8, %c0_9, %c0_10] : memref<18x24x4xf32, #tpu.memory_space<vmem>>, vector<18x1x4xf32>
    tpu.vector_store %arg5[%c0_8, %c0_9, %c0_10], %4 {strides = array<i32>} : memref<18x24x4xf32, #tpu.memory_space<vmem>>, vector<18x1x4xf32>,
    %c0_11 = arith.constant 0 : index
    %c17_12 = arith.constant 17 : index
    %c0_13 = arith.constant 0 : index
    %8 = vector.load %arg5[%c0_11, %c17_12, %c0_13] : memref<18x24x4xf32, #tpu.memory_space<vmem>>, vector<18x1x4xf32>
    tpu.vector_store %arg5[%c0_11, %c17_12, %c0_13], %4 {strides = array<i32>} : memref<18x24x4xf32, #tpu.memory_space<vmem>>, vector<18x1x4xf32>,
    %c1 = arith.constant 1 : index
    %c1_14 = arith.constant 1 : index
    %c0_15 = arith.constant 0 : index
    %9 = vector.load %arg5[%c1, %c1_14, %c0_15] : memref<18x24x4xf32, #tpu.memory_space<vmem>>, vector<16x16x4xf32>
    tpu.vector_store %arg5[%c1, %c1_14, %c0_15], %2 {strides = array<i32>} : memref<18x24x4xf32, #tpu.memory_space<vmem>>, vector<16x16x4xf32>,
    %c0_16 = arith.constant 0 : index
    %c0_17 = arith.constant 0 : index
    %c0_18 = arith.constant 0 : index
    %10 = vector.load %arg5[%c0_16, %c0_17, %c0_18] : memref<18x24x4xf32, #tpu.memory_space<vmem>>, vector<16x16x4xf32>
    %c0_19 = arith.constant 0 : index
    %c1_20 = arith.constant 1 : index
    %c0_21 = arith.constant 0 : index
    %11 = vector.load %arg5[%c0_19, %c1_20, %c0_21] : memref<18x24x4xf32, #tpu.memory_space<vmem>>, vector<16x16x4xf32>
    %c0_22 = arith.constant 0 : index
    %c2 = arith.constant 2 : index
    %c0_23 = arith.constant 0 : index
    %12 = vector.load %arg5[%c0_22, %c2, %c0_23] : memref<18x24x4xf32, #tpu.memory_space<vmem>>, vector<16x16x4xf32>
    %13 = tpu.concatenate %10, %11, %12 in 2 : vector<16x16x4xf32>, vector<16x16x4xf32>, vector<16x16x4xf32> -> vector<16x16x12xf32>
    %14 = vector.shape_cast %13 : vector<16x16x12xf32> to vector<256x12xf32>
    %c0_24 = arith.constant 0 : index
    %c0_25 = arith.constant 0 : index
    %15 = vector.load %arg2[%c0_24, %c0_25] : memref<36x4xf32, #tpu.memory_space<vmem>>, vector<12x4xf32>
    %cst_26 = arith.constant dense<0.000000e+00> : vector<256x4xf32>
    %16 = tpu.matmul %14, %15, %cst_26 {dimension_numbers = #tpu.dot_dimension_numbers<[1], [0], [0], [1], [0, 0, 1, 1], [], []>} : vector<256x12xf32>, vector<12x4xf32>, vector<256x4xf32> -> vector<256x4xf32>
    %c1_27 = arith.constant 1 : index
    %c0_28 = arith.constant 0 : index
    %c0_29 = arith.constant 0 : index
    %17 = vector.load %arg5[%c1_27, %c0_28, %c0_29] : memref<18x24x4xf32, #tpu.memory_space<vmem>>, vector<16x16x4xf32>
    %c1_30 = arith.constant 1 : index
    %c1_31 = arith.constant 1 : index
    %c0_32 = arith.constant 0 : index
    %18 = vector.load %arg5[%c1_30, %c1_31, %c0_32] : memref<18x24x4xf32, #tpu.memory_space<vmem>>, vector<16x16x4xf32>
    %c1_33 = arith.constant 1 : index
    %c2_34 = arith.constant 2 : index
    %c0_35 = arith.constant 0 : index
    %19 = vector.load %arg5[%c1_33, %c2_34, %c0_35] : memref<18x24x4xf32, #tpu.memory_space<vmem>>, vector<16x16x4xf32>
    %20 = tpu.concatenate %17, %18, %19 in 2 : vector<16x16x4xf32>, vector<16x16x4xf32>, vector<16x16x4xf32> -> vector<16x16x12xf32>
    %21 = vector.shape_cast %20 : vector<16x16x12xf32> to vector<256x12xf32>
    %c12 = arith.constant 12 : index
    %c0_36 = arith.constant 0 : index
    %22 = vector.load %arg2[%c12, %c0_36] : memref<36x4xf32, #tpu.memory_space<vmem>>, vector<12x4xf32>
    %cst_37 = arith.constant dense<0.000000e+00> : vector<256x4xf32>
    %23 = tpu.matmul %21, %22, %cst_37 {dimension_numbers = #tpu.dot_dimension_numbers<[1], [0], [0], [1], [0, 0, 1, 1], [], []>} : vector<256x12xf32>, vector<12x4xf32>, vector<256x4xf32> -> vector<256x4xf32>
    %24 = arith.addf %16, %23 : vector<256x4xf32>
    %c2_38 = arith.constant 2 : index
    %c0_39 = arith.constant 0 : index
    %c0_40 = arith.constant 0 : index
    %25 = vector.load %arg5[%c2_38, %c0_39, %c0_40] : memref<18x24x4xf32, #tpu.memory_space<vmem>>, vector<16x16x4xf32>
    %c2_41 = arith.constant 2 : index
    %c1_42 = arith.constant 1 : index
    %c0_43 = arith.constant 0 : index
    %26 = vector.load %arg5[%c2_41, %c1_42, %c0_43] : memref<18x24x4xf32, #tpu.memory_space<vmem>>, vector<16x16x4xf32>
    %c2_44 = arith.constant 2 : index
    %c2_45 = arith.constant 2 : index
    %c0_46 = arith.constant 0 : index
    %27 = vector.load %arg5[%c2_44, %c2_45, %c0_46] : memref<18x24x4xf32, #tpu.memory_space<vmem>>, vector<16x16x4xf32>
    %28 = tpu.concatenate %25, %26, %27 in 2 : vector<16x16x4xf32>, vector<16x16x4xf32>, vector<16x16x4xf32> -> vector<16x16x12xf32>
    %29 = vector.shape_cast %28 : vector<16x16x12xf32> to vector<256x12xf32>
    %c24 = arith.constant 24 : index
    %c0_47 = arith.constant 0 : index
    %30 = vector.load %arg2[%c24, %c0_47] : memref<36x4xf32, #tpu.memory_space<vmem>>, vector<12x4xf32>
    %cst_48 = arith.constant dense<0.000000e+00> : vector<256x4xf32>
    %31 = tpu.matmul %29, %30, %cst_48 {dimension_numbers = #tpu.dot_dimension_numbers<[1], [0], [0], [1], [0, 0, 1, 1], [], []>} : vector<256x12xf32>, vector<12x4xf32>, vector<256x4xf32> -> vector<256x4xf32>
    %32 = arith.addf %24, %31 : vector<256x4xf32>
    %c0_49 = arith.constant 0 : index
    %c0_50 = arith.constant 0 : index
    %c0_51 = arith.constant 0 : index
    %33 = vector.load %arg3[%c0_49, %c0_50, %c0_51] : memref<1x256x4xf32, #tpu.memory_space<vmem>>, vector<1x256x4xf32>
    %34 = vector.shape_cast %33 : vector<1x256x4xf32> to vector<256x4xf32>
    %35 = vector.shape_cast %32 : vector<256x4xf32> to vector<1x256x4xf32>
    tpu.vector_store %arg3[%c0_49, %c0_50, %c0_51], %35 {strides = array<i32>} : memref<1x256x4xf32, #tpu.memory_space<vmem>>, vector<1x256x4xf32>,
    %cst_52 = arith.constant 1.000000e+00 : f32
    %36 = vector.broadcast %cst_52 : f32 to vector<1x256xf32>
    %cst_53 = arith.constant dense<0.000000e+00> : vector<1x4xf32>
    %37 = tpu.matmul %36, %32, %cst_53 {dimension_numbers = #tpu.dot_dimension_numbers<[1], [0], [0], [1], [0, 0, 1, 1], [], []>} : vector<1x256xf32>, vector<256x4xf32>, vector<1x4xf32> -> vector<1x4xf32>
    %38 = arith.mulf %32, %32 : vector<256x4xf32>
    %cst_54 = arith.constant dense<0.000000e+00> : vector<1x4xf32>
    %39 = tpu.matmul %36, %38, %cst_54 {dimension_numbers = #tpu.dot_dimension_numbers<[1], [0], [0], [1], [0, 0, 1, 1], [], []>} : vector<1x256xf32>, vector<256x4xf32>, vector<1x4xf32> -> vector<1x4xf32>
    %40 = tpu.concatenate %37, %39 in 0 : vector<1x4xf32>, vector<1x4xf32> -> vector<2x4xf32>
    %c0_55 = arith.constant 0 : index
    %c0_56 = arith.constant 0 : index
    %c0_57 = arith.constant 0 : index
    %41 = vector.load %arg4[%c0_55, %c0_56, %c0_57] : memref<1x2x4xf32, #tpu.memory_space<vmem>>, vector<1x2x4xf32>
    %42 = vector.shape_cast %41 : vector<1x2x4xf32> to vector<2x4xf32>
    %43 = vector.shape_cast %40 : vector<2x4xf32> to vector<1x2x4xf32>
    tpu.vector_store %arg4[%c0_55, %c0_56, %c0_57], %43 {strides = array<i32>} : memref<1x2x4xf32, #tpu.memory_space<vmem>>, vector<1x2x4xf32>,
    return
  }
  func.func @transform_0(%arg0: i32) -> (i32, i32, i32) {
    %c0_i32 = arith.constant 0 : i32
    %c0_i32_0 = arith.constant 0 : i32
    %c0_i32_1 = arith.constant 0 : i32
    return %arg0, %c0_i32, %c0_i32_0 : i32, i32, i32
  }
  func.func @transform_1(%arg0: i32) -> (i32, i32) {
    %c0_i32 = arith.constant 0 : i32
    %c0_i32_0 = arith.constant 0 : i32
    %c0_i32_1 = arith.constant 0 : i32
    return %c0_i32, %c0_i32_0 : i32, i32
  }
  func.func @transform_2(%arg0: i32) -> (i32, i32, i32) {
    %c0_i32 = arith.constant 0 : i32
    %c0_i32_0 = arith.constant 0 : i32
    %c0_i32_1 = arith.constant 0 : i32
    return %arg0, %c0_i32, %c0_i32_0 : i32, i32, i32
  }
  func.func @transform_3(%arg0: i32) -> (i32, i32, i32) {
    %c0_i32 = arith.constant 0 : i32
    %c0_i32_0 = arith.constant 0 : i32
    %c0_i32_1 = arith.constant 0 : i32
    return %arg0, %c0_i32, %c0_i32_0 : i32, i32, i32
  }
}

</mosaic_0001>

<llo_original>
// kernel: tpu_custom_call.1
$region0: #{tpu_custom_call.1}
  #allocation0 [shape = 'u32[]', space=smem, size = 0x4, offset = 0x4, fixed_abs, tag = 'smem constant byte address 0x4 - core index']
  #allocation1 [shape = 'u32[144,128]{1,0:T(1,128)}', space=vmem, size = 0x12000, scoped, tag = 'internal scratch']
  #allocation2 [shape = 'f32[18,24,4]{2,1,0:T(8,128)}', space=vmem, size = 0x36000, scoped, tag = 'scratch operand']
  %s0 = inlined_call_operand.vmem [shape: f32[2,256,4], index: 0, kind: input, shape index: {}]
  %s1 = inlined_call_operand.vmem [shape: f32[36,4], index: 1, kind: input, shape index: {}]
  %s2 = inlined_call_operand.vmem [shape: f32[2,256,4], index: 2, kind: output, shape index: {0}]
  %s3 = inlined_call_operand.hbm [shape: f32[2,2,4], index: 3, kind: output, shape index: {1}]
  %4 = xla_tuple %s2, %s3
  %s5 = sld [smem:[#allocation0]]
  $region49: #{tpu_custom_call.1} parent=0
    _
  %s7 = ssub.s32 1, %s5
  %s8 = scalar_select 0, %s7, %s5
  $region1: #{tpu_custom_call.1} parent=0
    #allocation3 [shape = 'u8[2048]{0}', space=vmem, size = 0x800, scoped, tag = 'output window, operand 1']
    #allocation4 [shape = 's32[2]{0}', space=sflag, size = 0x8, scoped, tag = 'scoped memory for tpu_custom_call.1']
    %9 = vsyncpa [#allocation4], 0
    %s10 = scalar_lea.sflag [#allocation4], 1
    %11 = vsyncpa %s10, 0
    loop: start=0, step=1, limit=4
    $region2: #{tpu_custom_call.1} parent=1 // loop_pre_header
      _
    $region3: #{tpu_custom_call.1} parent=1 // loop_header
      %s13 = sphi 0, %s17
      %p14 = scmp.ge.s32.totalorder %s13, 4
      %s23 = sphi 0, %s25
      %s26 = sphi 0, %s23
      %s27 = sphi 0, %s26
      %s43 = sphi 0, %s27
      %s47 = sphi 0, %s47
      %s49 = sphi 0, %s47
      %s50 = sphi 0, %s49
      %s64 = sphi 0, %s50
      %s70 = sphi 0, %s72
      %s73 = sphi 0, %s70
      %s74 = sphi 0, %s73
      %s90 = sphi 0, %s74
      %s96 = sphi 0, %s98
      %s99 = sphi 0, %s96
      %s100 = sphi 0, %s99
      %s116 = sphi 0, %s100
    $region4: #{tpu_custom_call.1} parent=1 // loop_header_branch
      %16 = sbr.rel (%p14) target = $region8
    $region5: #{tpu_custom_call.1} parent=1 // loop_body
      %s18 = ssub.s32 %s13, 1
      %s19 = ssub.s32 %s13, 2
      %s20 = sadd.s32 %s13, 1
      %s21 = ssub.s32 %s13, %s20
      %p22 = scmp.eq.s32.totalorder %s21, 0
      %s24 = sadd.s32 %s23, 1
      %s25 = scalar_select %p22, %s23, %s24
      %p28 = pneg %p22
      %p29 = scmp.eq.s32.totalorder %s13, 1
      %p30 = por %p28, %p29
      %p31 = scmp.ne.s32.totalorder %s23, %s26
      %p32 = scmp.eq.s32.totalorder %s13, 0
      %p33 = por %p31, %p32
      %p34 = scmp.ne.s32.totalorder %s23, %s26
      %p35 = scmp.eq.s32.totalorder %s18, 1
      %p36 = por %p34, %p35
      %p37 = scmp.ne.s32.totalorder %s26, %s27
      %p38 = scmp.eq.s32.totalorder %s18, 0
      %p39 = por %p37, %p38
      %p40 = scmp.ne.s32.totalorder %s26, %s27
      %p41 = scmp.eq.s32.totalorder %s19, 1
      %p42 = por %p40, %p41
      %p44 = scmp.ne.s32.totalorder %s27, %s43
      %p45 = scmp.eq.s32.totalorder %s19, 0
      %p46 = por %p44, %p45
      %s48 = sadd.s32 %s47, 1
      %p51 = scmp.eq.s32.totalorder %s13, 1
      %p52 = scmp.ne.s32.totalorder %s47, %s49
      %p53 = scmp.eq.s32.totalorder %s13, 0
      %p54 = por %p52, %p53
      %p55 = scmp.ne.s32.totalorder %s47, %s49
      %p56 = scmp.eq.s32.totalorder %s18, 1
      %p57 = por %p55, %p56
      %p58 = scmp.ne.s32.totalorder %s49, %s50
      %p59 = scmp.eq.s32.totalorder %s18, 0
      %p60 = por %p58, %p59
      %p61 = scmp.ne.s32.totalorder %s49, %s50
      %p62 = scmp.eq.s32.totalorder %s19, 1
      %p63 = por %p61, %p62
      %p65 = scmp.ne.s32.totalorder %s50, %s64
      %p66 = scmp.eq.s32.totalorder %s19, 0
      %p67 = por %p65, %p66
      %s68 = ssub.s32 %s13, %s20
      %p69 = scmp.eq.s32.totalorder %s68, 0
      %s71 = sadd.s32 %s70, 1
      %s72 = scalar_select %p69, %s70, %s71
      %p75 = pneg %p69
      %p76 = scmp.eq.s32.totalorder %s13, 1
      %p77 = por %p75, %p76
      %p78 = scmp.ne.s32.totalorder %s70, %s73
      %p79 = scmp.eq.s32.totalorder %s13, 0
      %p80 = por %p78, %p79
      %p81 = scmp.ne.s32.totalorder %s70, %s73
      %p82 = scmp.eq.s32.totalorder %s18, 1
      %p83 = por %p81, %p82
      %p84 = scmp.ne.s32.totalorder %s73, %s74
      %p85 = scmp.eq.s32.totalorder %s18, 0
      %p86 = por %p84, %p85
      %p87 = scmp.ne.s32.totalorder %s73, %s74
      %p88 = scmp.eq.s32.totalorder %s19, 1
      %p89 = por %p87, %p88
      %p91 = scmp.ne.s32.totalorder %s74, %s90
      %p92 = scmp.eq.s32.totalorder %s19, 0
      %p93 = por %p91, %p92
      %s94 = ssub.s32 %s13, %s20
      %p95 = scmp.eq.s32.totalorder %s94, 0
      %s97 = sadd.s32 %s96, 1
      %s98 = scalar_select %p95, %s96, %s97
      %p101 = pneg %p95
      %p102 = scmp.eq.s32.totalorder %s13, 1
      %p103 = por %p101, %p102
      %p104 = scmp.ne.s32.totalorder %s96, %s99
      %p105 = scmp.eq.s32.totalorder %s13, 0
      %p106 = por %p104, %p105
      %p107 = scmp.ne.s32.totalorder %s96, %s99
      %p108 = scmp.eq.s32.totalorder %s18, 1
      %p109 = por %p107, %p108
      %p110 = scmp.ne.s32.totalorder %s99, %s100
      %p111 = scmp.eq.s32.totalorder %s18, 0
      %p112 = por %p110, %p111
      %p113 = scmp.ne.s32.totalorder %s99, %s100
      %p114 = scmp.eq.s32.totalorder %s19, 1
      %p115 = por %p113, %p114
      %p117 = scmp.ne.s32.totalorder %s100, %s116
      %p118 = scmp.eq.s32.totalorder %s19, 0
      %p119 = por %p117, %p118
      %p120 = scmp.le.s32.totalorder 1, %s13
      %p121 = scmp.lt.s32.totalorder %s13, 3
      %p122 = pnand %p120, %p121
      %p123 = pneg %p122
      // Predicated region
      $region9: #{tpu_custom_call.1} parent=5 // pred_check
        _
      $region10: #{tpu_custom_call.1} parent=5 // pred_check_branch
        %125 = sbr.rel (%p122) target = $region12
      $region11: #{tpu_custom_call.1} parent=5 // pred_region
        %s126 = ssub.s32 %s13, 1
        // Predicated region
        $region13: #{tpu_custom_call.1} parent=11 // pred_check
          %p127 = pneg %p60
        $region14: #{tpu_custom_call.1} parent=11 // pred_check_branch
          %129 = sbr.rel (%p127) target = $region16
        $region15: #{tpu_custom_call.1} parent=11 // pred_region
          _
        $region16: #{tpu_custom_call.1} parent=11 // pred_fallthru
          _
      $region12: #{tpu_custom_call.1} parent=5 // pred_fallthru
        _
      %p130 = scmp.lt.s32.totalorder %s13, 2
      // Predicated region
      $region17: #{tpu_custom_call.1} parent=5 // pred_check
        %p131 = pneg %p130
      $region18: #{tpu_custom_call.1} parent=5 // pred_check_branch
        %133 = sbr.rel (%p131) target = $region20
      $region19: #{tpu_custom_call.1} parent=5 // pred_region
        // Predicated region
        $region21: #{tpu_custom_call.1} parent=19 // pred_check
          %p134 = pneg %p33
        $region22: #{tpu_custom_call.1} parent=19 // pred_check_branch
          %136 = sbr.rel (%p134) target = $region24
        $region23: #{tpu_custom_call.1} parent=19 // pred_region
          %p137 = scmp.lt.s32.totalorder %s13, 1
          %s138 = scalar_select %p137, %s13, 1
          %s139 = smul.addr %s138, 32
          %s140 = smul.addr %s139, 8
          %s141 = scalar_lea.vmem %s0, %s140
        $region24: #{tpu_custom_call.1} parent=19 // pred_fallthru
          _
      $region20: #{tpu_custom_call.1} parent=5 // pred_fallthru
        _
      %p142 = scmp.le.s32.totalorder 1, %s13
      %p143 = scmp.lt.s32.totalorder %s13, 3
      %p144 = pnand %p142, %p143
      %p145 = pneg %p144
      // Predicated region
      $region25: #{tpu_custom_call.1} parent=5 // pred_check
        _
      $region26: #{tpu_custom_call.1} parent=5 // pred_check_branch
        %147 = sbr.rel (%p144) target = $region28
      $region27: #{tpu_custom_call.1} parent=5 // pred_region
        %s148 = ssub.s32 %s13, 1
        %p149 = scmp.lt.s32.totalorder %s18, 1
        %s150 = scalar_select %p149, %s18, 1
        %s151 = smul.addr %s150, 32
        %s152 = smul.addr %s151, 8
        %s153 = scalar_lea.vmem %s0, %s152
        %p154 = pneg %p39
        %p155 = pneg %p36
        %p156 = pneg %p60
        %p157 = pneg %p57
        %p158 = pneg %p86
        %p159 = pneg %p83
        %p160 = scmp.lt.s32.totalorder %s18, 1
        %s161 = scalar_select %p160, %s18, 1
        %s162 = smul.addr %s161, 32
        %s163 = smul.addr %s162, 8
        %s164 = scalar_lea.vmem %s2, %s163
        %p165 = pneg %p112
        %p166 = pneg %p109
        %s167 = sand.u32 %s99, 1
        %s168 = scalar_lea.sflag [#allocation4], %s167
        %s169 = sand.u32 %s99, 1
        %s170 = smul.addr %s169, 2
        %s171 = scalar_lea.vmem [#allocation3], %s170
        %p172 = scmp.lt.s32.totalorder %s18, 1
        %s173 = scalar_select %p172, %s18, 1
        %s174 = smul.addr %s173, 32
        %s175 = smul.addr %s174, 8
        %s176 = scalar_lea.vmem %s0, %s175
        %p177 = scmp.lt.s32.totalorder %s18, 1
        %s178 = scalar_select %p177, %s18, 1
        %s179 = smul.addr %s178, 32
        %s180 = smul.addr %s179, 8
        %s181 = scalar_lea.vmem %s2, %s180
        %v182 = vld [vmem:[%s176] sm:$0xff]
        %v183 = vld [vmem:[%s176 + $0x8] sm:$0xff]
        %v184 = vld [vmem:[%s176 + $0x10] sm:$0xff]
        %v185 = vld [vmem:[%s176 + $0x18] sm:$0xff]
        %v186 = vld [vmem:[%s176 + $0x20] sm:$0xff]
        %v187 = vld [vmem:[%s176 + $0x28] sm:$0xff]
        %v188 = vld [vmem:[%s176 + $0x30] sm:$0xff]
        %v189 = vld [vmem:[%s176 + $0x38] sm:$0xff]
        %v190 = vld [vmem:[%s176 + $0x40] sm:$0xff]
        %v191 = vld [vmem:[%s176 + $0x48] sm:$0xff]
        %v192 = vld [vmem:[%s176 + $0x50] sm:$0xff]
        %v193 = vld [vmem:[%s176 + $0x58] sm:$0xff]
        %v194 = vld [vmem:[%s176 + $0x60] sm:$0xff]
        %v195 = vld [vmem:[%s176 + $0x68] sm:$0xff]
        %v196 = vld [vmem:[%s176 + $0x70] sm:$0xff]
        %v197 = vld [vmem:[%s176 + $0x78] sm:$0xff]
        %v198 = vld [vmem:[%s176 + $0x80] sm:$0xff]
        %v199 = vld [vmem:[%s176 + $0x88] sm:$0xff]
        %v200 = vld [vmem:[%s176 + $0x90] sm:$0xff]
        %v201 = vld [vmem:[%s176 + $0x98] sm:$0xff]
        %v202 = vld [vmem:[%s176 + $0xa0] sm:$0xff]
        %v203 = vld [vmem:[%s176 + $0xa8] sm:$0xff]
        %v204 = vld [vmem:[%s176 + $0xb0] sm:$0xff]
        %v205 = vld [vmem:[%s176 + $0xb8] sm:$0xff]
        %v206 = vld [vmem:[%s176 + $0xc0] sm:$0xff]
        %v207 = vld [vmem:[%s176 + $0xc8] sm:$0xff]
        %v208 = vld [vmem:[%s176 + $0xd0] sm:$0xff]
        %v209 = vld [vmem:[%s176 + $0xd8] sm:$0xff]
        %v210 = vld [vmem:[%s176 + $0xe0] sm:$0xff]
        %v211 = vld [vmem:[%s176 + $0xe8] sm:$0xff]
        %v212 = vld [vmem:[%s176 + $0xf0] sm:$0xff]
        %v213 = vld [vmem:[%s176 + $0xf8] sm:$0xff]
        %vm214 = vcmask 31744
        %215 = vst.msk [vmem:[#allocation2] sm:$0xff] %vm214, 0.0
        %216 = vst.msk [vmem:[#allocation2 + $0x8] sm:$0xff] %vm214, 0.0
        %217 = vst.msk [vmem:[#allocation2 + $0x10] sm:$0xff] %vm214, 0.0
        %s218 = scalar_lea.vmem [#allocation2], 408
        %219 = vst.msk [vmem:[%s218] sm:$0xff] %vm214, 0.0
        %220 = vst.msk [vmem:[%s218 + $0x8] sm:$0xff] %vm214, 0.0
        %221 = vst.msk [vmem:[%s218 + $0x10] sm:$0xff] %vm214, 0.0
        %vm222 = vcmask 24576
        %223 = vst.msk [vmem:[#allocation2] sm:$0x1] %vm222, 0.0
        %224 = vst.msk [vmem:[#allocation2 + $0x18] sm:$0x1] %vm222, 0.0
        %225 = vst.msk [vmem:[#allocation2 + $0x30] sm:$0x1] %vm222, 0.0
        %226 = vst.msk [vmem:[#allocation2 + $0x48] sm:$0x1] %vm222, 0.0
        %227 = vst.msk [vmem:[#allocation2 + $0x60] sm:$0x1] %vm222, 0.0
        %228 = vst.msk [vmem:[#allocation2 + $0x78] sm:$0x1] %vm222, 0.0
        %229 = vst.msk [vmem:[#allocation2 + $0x90] sm:$0x1] %vm222, 0.0
        %230 = vst.msk [vmem:[#allocation2 + $0xa8] sm:$0x1] %vm222, 0.0
        %231 = vst.msk [vmem:[#allocation2 + $0xc0] sm:$0x1] %vm222, 0.0
        %232 = vst.msk [vmem:[#allocation2 + $0xd8] sm:$0x1] %vm222, 0.0
        %233 = vst.msk [vmem:[#allocation2 + $0xf0] sm:$0x1] %vm222, 0.0
        %234 = vst.msk [vmem:[#allocation2 + $0x108] sm:$0x1] %vm222, 0.0
        %235 = vst.msk [vmem:[#allocation2 + $0x120] sm:$0x1] %vm222, 0.0
        %236 = vst.msk [vmem:[#allocation2 + $0x138] sm:$0x1] %vm222, 0.0
        %237 = vst.msk [vmem:[#allocation2 + $0x150] sm:$0x1] %vm222, 0.0
        %238 = vst.msk [vmem:[#allocation2 + $0x168] sm:$0x1] %vm222, 0.0
        %239 = vst.msk [vmem:[#allocation2 + $0x180] sm:$0x1] %vm222, 0.0
        %240 = vst.msk [vmem:[#allocation2 + $0x198] sm:$0x1] %vm222, 0.0
        %241 = vst.msk [vmem:[#allocation2 + $0x11] sm:$0x1] %vm222, 0.0
        %242 = vst.msk [vmem:[#allocation2 + $0x29] sm:$0x1] %vm222, 0.0
        %243 = vst.msk [vmem:[#allocation2 + $0x41] sm:$0x1] %vm222, 0.0
        %244 = vst.msk [vmem:[#allocation2 + $0x59] sm:$0x1] %vm222, 0.0
        %245 = vst.msk [vmem:[#allocation2 + $0x71] sm:$0x1] %vm222, 0.0
        %246 = vst.msk [vmem:[#allocation2 + $0x89] sm:$0x1] %vm222, 0.0
        %247 = vst.msk [vmem:[#allocation2 + $0xa1] sm:$0x1] %vm222, 0.0
        %248 = vst.msk [vmem:[#allocation2 + $0xb9] sm:$0x1] %vm222, 0.0
        %249 = vst.msk [vmem:[#allocation2 + $0xd1] sm:$0x1] %vm222, 0.0
        %250 = vst.msk [vmem:[#allocation2 + $0xe9] sm:$0x1] %vm222, 0.0
        %251 = vst.msk [vmem:[#allocation2 + $0x101] sm:$0x1] %vm222, 0.0
        %252 = vst.msk [vmem:[#allocation2 + $0x119] sm:$0x1] %vm222, 0.0
        %253 = vst.msk [vmem:[#allocation2 + $0x131] sm:$0x1] %vm222, 0.0
        %254 = vst.msk [vmem:[#allocation2 + $0x149] sm:$0x1] %vm222, 0.0
        %255 = vst.msk [vmem:[#allocation2 + $0x161] sm:$0x1] %vm222, 0.0
        %256 = vst.msk [vmem:[#allocation2 + $0x179] sm:$0x1] %vm222, 0.0
        %257 = vst.msk [vmem:[#allocation2 + $0x191] sm:$0x1] %vm222, 0.0
        %258 = vst.msk [vmem:[#allocation2 + $0x1a9] sm:$0x1] %vm222, 0.0
        %s259 = scalar_lea.vmem [#allocation2], 24
        %260 = vst.msk [vmem:[%s259 + $0x1] sm:$0xff] %vm214, %v182
        %261 = vst.msk [vmem:[%s259 + $0x9] sm:$0xff] %vm214, %v183
        %262 = vst.msk [vmem:[%s259 + $0x19] sm:$0xff] %vm214, %v184
        %263 = vst.msk [vmem:[%s259 + $0x21] sm:$0xff] %vm214, %v185
        %264 = vst.msk [vmem:[%s259 + $0x31] sm:$0xff] %vm214, %v186
        %265 = vst.msk [vmem:[%s259 + $0x39] sm:$0xff] %vm214, %v187
        %266 = vst.msk [vmem:[%s259 + $0x49] sm:$0xff] %vm214, %v188
        %267 = vst.msk [vmem:[%s259 + $0x51] sm:$0xff] %vm214, %v189
        %268 = vst.msk [vmem:[%s259 + $0x61] sm:$0xff] %vm214, %v190
        %269 = vst.msk [vmem:[%s259 + $0x69] sm:$0xff] %vm214, %v191
        %270 = vst.msk [vmem:[%s259 + $0x79] sm:$0xff] %vm214, %v192
        %271 = vst.msk [vmem:[%s259 + $0x81] sm:$0xff] %vm214, %v193
        %272 = vst.msk [vmem:[%s259 + $0x91] sm:$0xff] %vm214, %v194
        %273 = vst.msk [vmem:[%s259 + $0x99] sm:$0xff] %vm214, %v195
        %274 = vst.msk [vmem:[%s259 + $0xa9] sm:$0xff] %vm214, %v196
        %275 = vst.msk [vmem:[%s259 + $0xb1] sm:$0xff] %vm214, %v197
        %276 = vst.msk [vmem:[%s259 + $0xc1] sm:$0xff] %vm214, %v198
        %277 = vst.msk [vmem:[%s259 + $0xc9] sm:$0xff] %vm214, %v199
        %278 = vst.msk [vmem:[%s259 + $0xd9] sm:$0xff] %vm214, %v200
        %279 = vst.msk [vmem:[%s259 + $0xe1] sm:$0xff] %vm214, %v201
        %280 = vst.msk [vmem:[%s259 + $0xf1] sm:$0xff] %vm214, %v202
        %281 = vst.msk [vmem:[%s259 + $0xf9] sm:$0xff] %vm214, %v203
        %282 = vst.msk [vmem:[%s259 + $0x109] sm:$0xff] %vm214, %v204
        %283 = vst.msk [vmem:[%s259 + $0x111] sm:$0xff] %vm214, %v205
        %284 = vst.msk [vmem:[%s259 + $0x121] sm:$0xff] %vm214, %v206
        %285 = vst.msk [vmem:[%s259 + $0x129] sm:$0xff] %vm214, %v207
        %286 = vst.msk [vmem:[%s259 + $0x139] sm:$0xff] %vm214, %v208
        %287 = vst.msk [vmem:[%s259 + $0x141] sm:$0xff] %vm214, %v209
        %288 = vst.msk [vmem:[%s259 + $0x151] sm:$0xff] %vm214, %v210
        %289 = vst.msk [vmem:[%s259 + $0x159] sm:$0xff] %vm214, %v211
        %290 = vst.msk [vmem:[%s259 + $0x169] sm:$0xff] %vm214, %v212
        %291 = vst.msk [vmem:[%s259 + $0x171] sm:$0xff] %vm214, %v213
        %v292 = vld [vmem:[#allocation2] sm:$0xff]
        %v293 = vld [vmem:[#allocation2 + $0x8] sm:$0xff]
        %v294 = vld [vmem:[#allocation2 + $0x18] sm:$0xff]
        %v295 = vld [vmem:[#allocation2 + $0x20] sm:$0xff]
        %v296 = vld [vmem:[#allocation2 + $0x30] sm:$0xff]
        %v297 = vld [vmem:[#allocation2 + $0x38] sm:$0xff]
        %v298 = vld [vmem:[#allocation2 + $0x48] sm:$0xff]
        %v299 = vld [vmem:[#allocation2 + $0x50] sm:$0xff]
        %v300 = vld [vmem:[#allocation2 + $0x60] sm:$0xff]
        %v301 = vld [vmem:[#allocation2 + $0x68] sm:$0xff]
        %v302 = vld [vmem:[#allocation2 + $0x78] sm:$0xff]
        %v303 = vld [vmem:[#allocation2 + $0x80] sm:$0xff]
        %v304 = vld [vmem:[#allocation2 + $0x90] sm:$0xff]
        %v305 = vld [vmem:[#allocation2 + $0x98] sm:$0xff]
        %v306 = vld [vmem:[#allocation2 + $0xa8] sm:$0xff]
        %v307 = vld [vmem:[#allocation2 + $0xb0] sm:$0xff]
        %v308 = vld [vmem:[#allocation2 + $0xc0] sm:$0xff]
        %v309 = vld [vmem:[#allocation2 + $0xc8] sm:$0xff]
        %v310 = vld [vmem:[#allocation2 + $0xd8] sm:$0xff]
        %v311 = vld [vmem:[#allocation2 + $0xe0] sm:$0xff]
        %v312 = vld [vmem:[#allocation2 + $0xf0] sm:$0xff]
        %v313 = vld [vmem:[#allocation2 + $0xf8] sm:$0xff]
        %v314 = vld [vmem:[#allocation2 + $0x108] sm:$0xff]
        %v315 = vld [vmem:[#allocation2 + $0x110] sm:$0xff]
        %v316 = vld [vmem:[#allocation2 + $0x120] sm:$0xff]
        %v317 = vld [vmem:[#allocation2 + $0x128] sm:$0xff]
        %v318 = vld [vmem:[#allocation2 + $0x138] sm:$0xff]
        %v319 = vld [vmem:[#allocation2 + $0x140] sm:$0xff]
        %v320 = vld [vmem:[#allocation2 + $0x150] sm:$0xff]
        %v321 = vld [vmem:[#allocation2 + $0x158] sm:$0xff]
        %v322 = vld [vmem:[#allocation2 + $0x168] sm:$0xff]
        %v323 = vld [vmem:[#allocation2 + $0x170] sm:$0xff]
        %v324 = vld [vmem:[#allocation2 + $0x1] sm:$0xff]
        %v325 = vld [vmem:[#allocation2 + $0x9] sm:$0xff]
        %v326 = vld [vmem:[#allocation2 + $0x19] sm:$0xff]
        %v327 = vld [vmem:[#allocation2 + $0x21] sm:$0xff]
        %v328 = vld [vmem:[#allocation2 + $0x31] sm:$0xff]
        %v329 = vld [vmem:[#allocation2 + $0x39] sm:$0xff]
        %v330 = vld [vmem:[#allocation2 + $0x49] sm:$0xff]
        %v331 = vld [vmem:[#allocation2 + $0x51] sm:$0xff]
        %v332 = vld [vmem:[#allocation2 + $0x61] sm:$0xff]
        %v333 = vld [vmem:[#allocation2 + $0x69] sm:$0xff]
        %v334 = vld [vmem:[#allocation2 + $0x79] sm:$0xff]
        %v335 = vld [vmem:[#allocation2 + $0x81] sm:$0xff]
        %v336 = vld [vmem:[#allocation2 + $0x91] sm:$0xff]
        %v337 = vld [vmem:[#allocation2 + $0x99] sm:$0xff]
        %v338 = vld [vmem:[#allocation2 + $0xa9] sm:$0xff]
        %v339 = vld [vmem:[#allocation2 + $0xb1] sm:$0xff]
        %v340 = vld [vmem:[#allocation2 + $0xc1] sm:$0xff]
        %v341 = vld [vmem:[#allocation2 + $0xc9] sm:$0xff]
        %v342 = vld [vmem:[#allocation2 + $0xd9] sm:$0xff]
        %v343 = vld [vmem:[#allocation2 + $0xe1] sm:$0xff]
        %v344 = vld [vmem:[#allocation2 + $0xf1] sm:$0xff]
        %v345 = vld [vmem:[#allocation2 + $0xf9] sm:$0xff]
        %v346 = vld [vmem:[#allocation2 + $0x109] sm:$0xff]
        %v347 = vld [vmem:[#allocation2 + $0x111] sm:$0xff]
        %v348 = vld [vmem:[#allocation2 + $0x121] sm:$0xff]
        %v349 = vld [vmem:[#allocation2 + $0x129] sm:$0xff]
        %v350 = vld [vmem:[#allocation2 + $0x139] sm:$0xff]
        %v351 = vld [vmem:[#allocation2 + $0x141] sm:$0xff]
        %v352 = vld [vmem:[#allocation2 + $0x151] sm:$0xff]
        %v353 = vld [vmem:[#allocation2 + $0x159] sm:$0xff]
        %v354 = vld [vmem:[#allocation2 + $0x169] sm:$0xff]
        %v355 = vld [vmem:[#allocation2 + $0x171] sm:$0xff]
        %v356 = vld [vmem:[#allocation2 + $0x2] sm:$0xff]
        %v357 = vld [vmem:[#allocation2 + $0xa] sm:$0xff]
        %v358 = vld [vmem:[#allocation2 + $0x1a] sm:$0xff]
        %v359 = vld [vmem:[#allocation2 + $0x22] sm:$0xff]
        %v360 = vld [vmem:[#allocation2 + $0x32] sm:$0xff]
        %v361 = vld [vmem:[#allocation2 + $0x3a] sm:$0xff]
        %v362 = vld [vmem:[#allocation2 + $0x4a] sm:$0xff]
        %v363 = vld [vmem:[#allocation2 + $0x52] sm:$0xff]
        %v364 = vld [vmem:[#allocation2 + $0x62] sm:$0xff]
        %v365 = vld [vmem:[#allocation2 + $0x6a] sm:$0xff]
        %v366 = vld [vmem:[#allocation2 + $0x7a] sm:$0xff]
        %v367 = vld [vmem:[#allocation2 + $0x82] sm:$0xff]
        %v368 = vld [vmem:[#allocation2 + $0x92] sm:$0xff]
        %v369 = vld [vmem:[#allocation2 + $0x9a] sm:$0xff]
        %v370 = vld [vmem:[#allocation2 + $0xaa] sm:$0xff]
        %v371 = vld [vmem:[#allocation2 + $0xb2] sm:$0xff]
        %v372 = vld [vmem:[#allocation2 + $0xc2] sm:$0xff]
        %v373 = vld [vmem:[#allocation2 + $0xca] sm:$0xff]
        %v374 = vld [vmem:[#allocation2 + $0xda] sm:$0xff]
        %v375 = vld [vmem:[#allocation2 + $0xe2] sm:$0xff]
        %v376 = vld [vmem:[#allocation2 + $0xf2] sm:$0xff]
        %v377 = vld [vmem:[#allocation2 + $0xfa] sm:$0xff]
        %v378 = vld [vmem:[#allocation2 + $0x10a] sm:$0xff]
        %v379 = vld [vmem:[#allocation2 + $0x112] sm:$0xff]
        %v380 = vld [vmem:[#allocation2 + $0x122] sm:$0xff]
        %v381 = vld [vmem:[#allocation2 + $0x12a] sm:$0xff]
        %v382 = vld [vmem:[#allocation2 + $0x13a] sm:$0xff]
        %v383 = vld [vmem:[#allocation2 + $0x142] sm:$0xff]
        %v384 = vld [vmem:[#allocation2 + $0x152] sm:$0xff]
        %v385 = vld [vmem:[#allocation2 + $0x15a] sm:$0xff]
        %v386 = vld [vmem:[#allocation2 + $0x16a] sm:$0xff]
        %v387 = vld [vmem:[#allocation2 + $0x172] sm:$0xff]
        %420 = vrot.lane.b32.xlu0 %v324, 4
        %v421 = vpop.permute.xlu0 %420
        %422 = vrot.lane.b32.xlu0 %v325, 4
        %v423 = vpop.permute.xlu0 %422
        %424 = vrot.lane.b32.xlu0 %v326, 4
        %v425 = vpop.permute.xlu0 %424
        %426 = vrot.lane.b32.xlu0 %v327, 4
        %v427 = vpop.permute.xlu0 %426
        %428 = vrot.lane.b32.xlu0 %v328, 4
        %v429 = vpop.permute.xlu0 %428
        %430 = vrot.lane.b32.xlu0 %v329, 4
        %v431 = vpop.permute.xlu0 %430
        %432 = vrot.lane.b32.xlu0 %v330, 4
        %v433 = vpop.permute.xlu0 %432
        %434 = vrot.lane.b32.xlu0 %v331, 4
        %v435 = vpop.permute.xlu0 %434
        %436 = vrot.lane.b32.xlu0 %v332, 4
        %v437 = vpop.permute.xlu0 %436
        %438 = vrot.lane.b32.xlu0 %v333, 4
        %v439 = vpop.permute.xlu0 %438
        %440 = vrot.lane.b32.xlu0 %v334, 4
        %v441 = vpop.permute.xlu0 %440
        %442 = vrot.lane.b32.xlu0 %v335, 4
        %v443 = vpop.permute.xlu0 %442
        %444 = vrot.lane.b32.xlu0 %v336, 4
        %v445 = vpop.permute.xlu0 %444
        %446 = vrot.lane.b32.xlu0 %v337, 4
        %v447 = vpop.permute.xlu0 %446
        %448 = vrot.lane.b32.xlu0 %v338, 4
        %v449 = vpop.permute.xlu0 %448
        %450 = vrot.lane.b32.xlu0 %v339, 4
        %v451 = vpop.permute.xlu0 %450
        %452 = vrot.lane.b32.xlu0 %v340, 4
        %v453 = vpop.permute.xlu0 %452
        %454 = vrot.lane.b32.xlu0 %v341, 4
        %v455 = vpop.permute.xlu0 %454
        %456 = vrot.lane.b32.xlu0 %v342, 4
        %v457 = vpop.permute.xlu0 %456
        %458 = vrot.lane.b32.xlu0 %v343, 4
        %v459 = vpop.permute.xlu0 %458
        %460 = vrot.lane.b32.xlu0 %v344, 4
        %v461 = vpop.permute.xlu0 %460
        %462 = vrot.lane.b32.xlu0 %v345, 4
        %v463 = vpop.permute.xlu0 %462
        %464 = vrot.lane.b32.xlu0 %v346, 4
        %v465 = vpop.permute.xlu0 %464
        %466 = vrot.lane.b32.xlu0 %v347, 4
        %v467 = vpop.permute.xlu0 %466
        %468 = vrot.lane.b32.xlu0 %v348, 4
        %v469 = vpop.permute.xlu0 %468
        %470 = vrot.lane.b32.xlu0 %v349, 4
        %v471 = vpop.permute.xlu0 %470
        %472 = vrot.lane.b32.xlu0 %v350, 4
        %v473 = vpop.permute.xlu0 %472
        %474 = vrot.lane.b32.xlu0 %v351, 4
        %v475 = vpop.permute.xlu0 %474
        %476 = vrot.lane.b32.xlu0 %v352, 4
        %v477 = vpop.permute.xlu0 %476
        %478 = vrot.lane.b32.xlu0 %v353, 4
        %v479 = vpop.permute.xlu0 %478
        %480 = vrot.lane.b32.xlu0 %v354, 4
        %v481 = vpop.permute.xlu0 %480
        %482 = vrot.lane.b32.xlu0 %v355, 4
        %v483 = vpop.permute.xlu0 %482
        %548 = vrot.lane.b32.xlu0 %v356, 8
        %v549 = vpop.permute.xlu0 %548
        %550 = vrot.lane.b32.xlu0 %v357, 8
        %v551 = vpop.permute.xlu0 %550
        %552 = vrot.lane.b32.xlu0 %v358, 8
        %v553 = vpop.permute.xlu0 %552
        %554 = vrot.lane.b32.xlu0 %v359, 8
        %v555 = vpop.permute.xlu0 %554
        %556 = vrot.lane.b32.xlu0 %v360, 8
        %v557 = vpop.permute.xlu0 %556
        %558 = vrot.lane.b32.xlu0 %v361, 8
        %v559 = vpop.permute.xlu0 %558
        %560 = vrot.lane.b32.xlu0 %v362, 8
        %v561 = vpop.permute.xlu0 %560
        %562 = vrot.lane.b32.xlu0 %v363, 8
        %v563 = vpop.permute.xlu0 %562
        %564 = vrot.lane.b32.xlu0 %v364, 8
        %v565 = vpop.permute.xlu0 %564
        %566 = vrot.lane.b32.xlu0 %v365, 8
        %v567 = vpop.permute.xlu0 %566
        %568 = vrot.lane.b32.xlu0 %v366, 8
        %v569 = vpop.permute.xlu0 %568
        %570 = vrot.lane.b32.xlu0 %v367, 8
        %v571 = vpop.permute.xlu0 %570
        %572 = vrot.lane.b32.xlu0 %v368, 8
        %v573 = vpop.permute.xlu0 %572
        %574 = vrot.lane.b32.xlu0 %v369, 8
        %v575 = vpop.permute.xlu0 %574
        %576 = vrot.lane.b32.xlu0 %v370, 8
        %v577 = vpop.permute.xlu0 %576
        %578 = vrot.lane.b32.xlu0 %v371, 8
        %v579 = vpop.permute.xlu0 %578
        %580 = vrot.lane.b32.xlu0 %v372, 8
        %v581 = vpop.permute.xlu0 %580
        %582 = vrot.lane.b32.xlu0 %v373, 8
        %v583 = vpop.permute.xlu0 %582
        %584 = vrot.lane.b32.xlu0 %v374, 8
        %v585 = vpop.permute.xlu0 %584
        %586 = vrot.lane.b32.xlu0 %v375, 8
        %v587 = vpop.permute.xlu0 %586
        %588 = vrot.lane.b32.xlu0 %v376, 8
        %v589 = vpop.permute.xlu0 %588
        %590 = vrot.lane.b32.xlu0 %v377, 8
        %v591 = vpop.permute.xlu0 %590
        %592 = vrot.lane.b32.xlu0 %v378, 8
        %v593 = vpop.permute.xlu0 %592
        %594 = vrot.lane.b32.xlu0 %v379, 8
        %v595 = vpop.permute.xlu0 %594
        %596 = vrot.lane.b32.xlu0 %v380, 8
        %v597 = vpop.permute.xlu0 %596
        %598 = vrot.lane.b32.xlu0 %v381, 8
        %v599 = vpop.permute.xlu0 %598
        %600 = vrot.lane.b32.xlu0 %v382, 8
        %v601 = vpop.permute.xlu0 %600
        %602 = vrot.lane.b32.xlu0 %v383, 8
        %v603 = vpop.permute.xlu0 %602
        %604 = vrot.lane.b32.xlu0 %v384, 8
        %v605 = vpop.permute.xlu0 %604
        %606 = vrot.lane.b32.xlu0 %v385, 8
        %v607 = vpop.permute.xlu0 %606
        %608 = vrot.lane.b32.xlu0 %v386, 8
        %v609 = vpop.permute.xlu0 %608
        %610 = vrot.lane.b32.xlu0 %v387, 8
        %v611 = vpop.permute.xlu0 %610
        %v644 = vsel %vm214, %v292, %v421
        %v645 = vsel %vm214, %v293, %v423
        %v646 = vsel %vm214, %v294, %v425
        %v647 = vsel %vm214, %v295, %v427
        %v648 = vsel %vm214, %v296, %v429
        %v649 = vsel %vm214, %v297, %v431
        %v650 = vsel %vm214, %v298, %v433
        %v651 = vsel %vm214, %v299, %v435
        %v652 = vsel %vm214, %v300, %v437
        %v653 = vsel %vm214, %v301, %v439
        %v654 = vsel %vm214, %v302, %v441
        %v655 = vsel %vm214, %v303, %v443
        %v656 = vsel %vm214, %v304, %v445
        %v657 = vsel %vm214, %v305, %v447
        %v658 = vsel %vm214, %v306, %v449
        %v659 = vsel %vm214, %v307, %v451
        %v660 = vsel %vm214, %v308, %v453
        %v661 = vsel %vm214, %v309, %v455
        %v662 = vsel %vm214, %v310, %v457
        %v663 = vsel %vm214, %v311, %v459
        %v664 = vsel %vm214, %v312, %v461
        %v665 = vsel %vm214, %v313, %v463
        %v666 = vsel %vm214, %v314, %v465
        %v667 = vsel %vm214, %v315, %v467
        %v668 = vsel %vm214, %v316, %v469
        %v669 = vsel %vm214, %v317, %v471
        %v670 = vsel %vm214, %v318, %v473
        %v671 = vsel %vm214, %v319, %v475
        %v672 = vsel %vm214, %v320, %v477
        %v673 = vsel %vm214, %v321, %v479
        %v674 = vsel %vm214, %v322, %v481
        %v675 = vsel %vm214, %v323, %v483
        %vm676 = vcmask 64512
        %v677 = vsel %vm676, %v644, %v549
        %v678 = vsel %vm676, %v645, %v551
        %v679 = vsel %vm676, %v646, %v553
        %v680 = vsel %vm676, %v647, %v555
        %v681 = vsel %vm676, %v648, %v557
        %v682 = vsel %vm676, %v649, %v559
        %v683 = vsel %vm676, %v650, %v561
        %v684 = vsel %vm676, %v651, %v563
        %v685 = vsel %vm676, %v652, %v565
        %v686 = vsel %vm676, %v653, %v567
        %v687 = vsel %vm676, %v654, %v569
        %v688 = vsel %vm676, %v655, %v571
        %v689 = vsel %vm676, %v656, %v573
        %v690 = vsel %vm676, %v657, %v575
        %v691 = vsel %vm676, %v658, %v577
        %v692 = vsel %vm676, %v659, %v579
        %v693 = vsel %vm676, %v660, %v581
        %v694 = vsel %vm676, %v661, %v583
        %v695 = vsel %vm676, %v662, %v585
        %v696 = vsel %vm676, %v663, %v587
        %v697 = vsel %vm676, %v664, %v589
        %v698 = vsel %vm676, %v665, %v591
        %v699 = vsel %vm676, %v666, %v593
        %v700 = vsel %vm676, %v667, %v595
        %v701 = vsel %vm676, %v668, %v597
        %v702 = vsel %vm676, %v669, %v599
        %v703 = vsel %vm676, %v670, %v601
        %v704 = vsel %vm676, %v671, %v603
        %v705 = vsel %vm676, %v672, %v605
        %v706 = vsel %vm676, %v673, %v607
        %v707 = vsel %vm676, %v674, %v609
        %v708 = vsel %vm676, %v675, %v611
        %v709 = vld [vmem:[%s1] sm:$0xff]
        %v710 = vld [vmem:[%s1 + $0x8] sm:$0xf]
        %v711 = vld [vmem:[%s259] sm:$0xff]
        %v712 = vld [vmem:[%s259 + $0x8] sm:$0xff]
        %v713 = vld [vmem:[%s259 + $0x18] sm:$0xff]
        %v714 = vld [vmem:[%s259 + $0x20] sm:$0xff]
        %v715 = vld [vmem:[%s259 + $0x30] sm:$0xff]
        %v716 = vld [vmem:[%s259 + $0x38] sm:$0xff]
        %v717 = vld [vmem:[%s259 + $0x48] sm:$0xff]
        %v718 = vld [vmem:[%s259 + $0x50] sm:$0xff]
        %v719 = vld [vmem:[%s259 + $0x60] sm:$0xff]
        %v720 = vld [vmem:[%s259 + $0x68] sm:$0xff]
        %v721 = vld [vmem:[%s259 + $0x78] sm:$0xff]
        %v722 = vld [vmem:[%s259 + $0x80] sm:$0xff]
        %v723 = vld [vmem:[%s259 + $0x90] sm:$0xff]
        %v724 = vld [vmem:[%s259 + $0x98] sm:$0xff]
        %v725 = vld [vmem:[%s259 + $0xa8] sm:$0xff]
        %v726 = vld [vmem:[%s259 + $0xb0] sm:$0xff]
        %v727 = vld [vmem:[%s259 + $0xc0] sm:$0xff]
        %v728 = vld [vmem:[%s259 + $0xc8] sm:$0xff]
        %v729 = vld [vmem:[%s259 + $0xd8] sm:$0xff]
        %v730 = vld [vmem:[%s259 + $0xe0] sm:$0xff]
        %v731 = vld [vmem:[%s259 + $0xf0] sm:$0xff]
        %v732 = vld [vmem:[%s259 + $0xf8] sm:$0xff]
        %v733 = vld [vmem:[%s259 + $0x108] sm:$0xff]
        %v734 = vld [vmem:[%s259 + $0x110] sm:$0xff]
        %v735 = vld [vmem:[%s259 + $0x120] sm:$0xff]
        %v736 = vld [vmem:[%s259 + $0x128] sm:$0xff]
        %v737 = vld [vmem:[%s259 + $0x138] sm:$0xff]
        %v738 = vld [vmem:[%s259 + $0x140] sm:$0xff]
        %v739 = vld [vmem:[%s259 + $0x150] sm:$0xff]
        %v740 = vld [vmem:[%s259 + $0x158] sm:$0xff]
        %v741 = vld [vmem:[%s259 + $0x168] sm:$0xff]
        %v742 = vld [vmem:[%s259 + $0x170] sm:$0xff]
        %v743 = vld [vmem:[%s259 + $0x1] sm:$0xff]
        %v744 = vld [vmem:[%s259 + $0x9] sm:$0xff]
        %v745 = vld [vmem:[%s259 + $0x19] sm:$0xff]
        %v746 = vld [vmem:[%s259 + $0x21] sm:$0xff]
        %v747 = vld [vmem:[%s259 + $0x31] sm:$0xff]
        %v748 = vld [vmem:[%s259 + $0x39] sm:$0xff]
        %v749 = vld [vmem:[%s259 + $0x49] sm:$0xff]
        %v750 = vld [vmem:[%s259 + $0x51] sm:$0xff]
        %v751 = vld [vmem:[%s259 + $0x61] sm:$0xff]
        %v752 = vld [vmem:[%s259 + $0x69] sm:$0xff]
        %v753 = vld [vmem:[%s259 + $0x79] sm:$0xff]
        %v754 = vld [vmem:[%s259 + $0x81] sm:$0xff]
        %v755 = vld [vmem:[%s259 + $0x91] sm:$0xff]
        %v756 = vld [vmem:[%s259 + $0x99] sm:$0xff]
        %v757 = vld [vmem:[%s259 + $0xa9] sm:$0xff]
        %v758 = vld [vmem:[%s259 + $0xb1] sm:$0xff]
        %v759 = vld [vmem:[%s259 + $0xc1] sm:$0xff]
        %v760 = vld [vmem:[%s259 + $0xc9] sm:$0xff]
        %v761 = vld [vmem:[%s259 + $0xd9] sm:$0xff]
        %v762 = vld [vmem:[%s259 + $0xe1] sm:$0xff]
        %v763 = vld [vmem:[%s259 + $0xf1] sm:$0xff]
        %v764 = vld [vmem:[%s259 + $0xf9] sm:$0xff]
        %v765 = vld [vmem:[%s259 + $0x109] sm:$0xff]
        %v766 = vld [vmem:[%s259 + $0x111] sm:$0xff]
        %v767 = vld [vmem:[%s259 + $0x121] sm:$0xff]
        %v768 = vld [vmem:[%s259 + $0x129] sm:$0xff]
        %v769 = vld [vmem:[%s259 + $0x139] sm:$0xff]
        %v770 = vld [vmem:[%s259 + $0x141] sm:$0xff]
        %v771 = vld [vmem:[%s259 + $0x151] sm:$0xff]
        %v772 = vld [vmem:[%s259 + $0x159] sm:$0xff]
        %v773 = vld [vmem:[%s259 + $0x169] sm:$0xff]
        %v774 = vld [vmem:[%s259 + $0x171] sm:$0xff]
        %v775 = vld [vmem:[%s259 + $0x2] sm:$0xff]
        %v776 = vld [vmem:[%s259 + $0xa] sm:$0xff]
        %v777 = vld [vmem:[%s259 + $0x1a] sm:$0xff]
        %v778 = vld [vmem:[%s259 + $0x22] sm:$0xff]
        %v779 = vld [vmem:[%s259 + $0x32] sm:$0xff]
        %v780 = vld [vmem:[%s259 + $0x3a] sm:$0xff]
        %v781 = vld [vmem:[%s259 + $0x4a] sm:$0xff]
        %v782 = vld [vmem:[%s259 + $0x52] sm:$0xff]
        %v783 = vld [vmem:[%s259 + $0x62] sm:$0xff]
        %v784 = vld [vmem:[%s259 + $0x6a] sm:$0xff]
        %v785 = vld [vmem:[%s259 + $0x7a] sm:$0xff]
        %v786 = vld [vmem:[%s259 + $0x82] sm:$0xff]
        %v787 = vld [vmem:[%s259 + $0x92] sm:$0xff]
        %v788 = vld [vmem:[%s259 + $0x9a] sm:$0xff]
        %v789 = vld [vmem:[%s259 + $0xaa] sm:$0xff]
        %v790 = vld [vmem:[%s259 + $0xb2] sm:$0xff]
        %v791 = vld [vmem:[%s259 + $0xc2] sm:$0xff]
        %v792 = vld [vmem:[%s259 + $0xca] sm:$0xff]
        %v793 = vld [vmem:[%s259 + $0xda] sm:$0xff]
        %v794 = vld [vmem:[%s259 + $0xe2] sm:$0xff]
        %v795 = vld [vmem:[%s259 + $0xf2] sm:$0xff]
        %v796 = vld [vmem:[%s259 + $0xfa] sm:$0xff]
        %v797 = vld [vmem:[%s259 + $0x10a] sm:$0xff]
        %v798 = vld [vmem:[%s259 + $0x112] sm:$0xff]
        %v799 = vld [vmem:[%s259 + $0x122] sm:$0xff]
        %v800 = vld [vmem:[%s259 + $0x12a] sm:$0xff]
        %v801 = vld [vmem:[%s259 + $0x13a] sm:$0xff]
        %v802 = vld [vmem:[%s259 + $0x142] sm:$0xff]
        %v803 = vld [vmem:[%s259 + $0x152] sm:$0xff]
        %v804 = vld [vmem:[%s259 + $0x15a] sm:$0xff]
        %v805 = vld [vmem:[%s259 + $0x16a] sm:$0xff]
        %v806 = vld [vmem:[%s259 + $0x172] sm:$0xff]
        %839 = vrot.lane.b32.xlu0 %v743, 4
        %v840 = vpop.permute.xlu0 %839
        %841 = vrot.lane.b32.xlu0 %v744, 4
        %v842 = vpop.permute.xlu0 %841
        %843 = vrot.lane.b32.xlu0 %v745, 4
        %v844 = vpop.permute.xlu0 %843
        %845 = vrot.lane.b32.xlu0 %v746, 4
        %v846 = vpop.permute.xlu0 %845
        %847 = vrot.lane.b32.xlu0 %v747, 4
        %v848 = vpop.permute.xlu0 %847
        %849 = vrot.lane.b32.xlu0 %v748, 4
        %v850 = vpop.permute.xlu0 %849
        %851 = vrot.lane.b32.xlu0 %v749, 4
        %v852 = vpop.permute.xlu0 %851
        %853 = vrot.lane.b32.xlu0 %v750, 4
        %v854 = vpop.permute.xlu0 %853
        %855 = vrot.lane.b32.xlu0 %v751, 4
        %v856 = vpop.permute.xlu0 %855
        %857 = vrot.lane.b32.xlu0 %v752, 4
        %v858 = vpop.permute.xlu0 %857
        %859 = vrot.lane.b32.xlu0 %v753, 4
        %v860 = vpop.permute.xlu0 %859
        %861 = vrot.lane.b32.xlu0 %v754, 4
        %v862 = vpop.permute.xlu0 %861
        %863 = vrot.lane.b32.xlu0 %v755, 4
        %v864 = vpop.permute.xlu0 %863
        %865 = vrot.lane.b32.xlu0 %v756, 4
        %v866 = vpop.permute.xlu0 %865
        %867 = vrot.lane.b32.xlu0 %v757, 4
        %v868 = vpop.permute.xlu0 %867
        %869 = vrot.lane.b32.xlu0 %v758, 4
        %v870 = vpop.permute.xlu0 %869
        %871 = vrot.lane.b32.xlu0 %v759, 4
        %v872 = vpop.permute.xlu0 %871
        %873 = vrot.lane.b32.xlu0 %v760, 4
        %v874 = vpop.permute.xlu0 %873
        %875 = vrot.lane.b32.xlu0 %v761, 4
        %v876 = vpop.permute.xlu0 %875
        %877 = vrot.lane.b32.xlu0 %v762, 4
        %v878 = vpop.permute.xlu0 %877
        %879 = vrot.lane.b32.xlu0 %v763, 4
        %v880 = vpop.permute.xlu0 %879
        %881 = vrot.lane.b32.xlu0 %v764, 4
        %v882 = vpop.permute.xlu0 %881
        %883 = vrot.lane.b32.xlu0 %v765, 4
        %v884 = vpop.permute.xlu0 %883
        %885 = vrot.lane.b32.xlu0 %v766, 4
        %v886 = vpop.permute.xlu0 %885
        %887 = vrot.lane.b32.xlu0 %v767, 4
        %v888 = vpop.permute.xlu0 %887
        %889 = vrot.lane.b32.xlu0 %v768, 4
        %v890 = vpop.permute.xlu0 %889
        %891 = vrot.lane.b32.xlu0 %v769, 4
        %v892 = vpop.permute.xlu0 %891
        %893 = vrot.lane.b32.xlu0 %v770, 4
        %v894 = vpop.permute.xlu0 %893
        %895 = vrot.lane.b32.xlu0 %v771, 4
        %v896 = vpop.permute.xlu0 %895
        %897 = vrot.lane.b32.xlu0 %v772, 4
        %v898 = vpop.permute.xlu0 %897
        %899 = vrot.lane.b32.xlu0 %v773, 4
        %v900 = vpop.permute.xlu0 %899
        %901 = vrot.lane.b32.xlu0 %v774, 4
        %v902 = vpop.permute.xlu0 %901
        %967 = vrot.lane.b32.xlu0 %v775, 8
        %v968 = vpop.permute.xlu0 %967
        %969 = vrot.lane.b32.xlu0 %v776, 8
        %v970 = vpop.permute.xlu0 %969
        %971 = vrot.lane.b32.xlu0 %v777, 8
        %v972 = vpop.permute.xlu0 %971
        %973 = vrot.lane.b32.xlu0 %v778, 8
        %v974 = vpop.permute.xlu0 %973
        %975 = vrot.lane.b32.xlu0 %v779, 8
        %v976 = vpop.permute.xlu0 %975
        %977 = vrot.lane.b32.xlu0 %v780, 8
        %v978 = vpop.permute.xlu0 %977
        %979 = vrot.lane.b32.xlu0 %v781, 8
        %v980 = vpop.permute.xlu0 %979
        %981 = vrot.lane.b32.xlu0 %v782, 8
        %v982 = vpop.permute.xlu0 %981
        %983 = vrot.lane.b32.xlu0 %v783, 8
        %v984 = vpop.permute.xlu0 %983
        %985 = vrot.lane.b32.xlu0 %v784, 8
        %v986 = vpop.permute.xlu0 %985
        %987 = vrot.lane.b32.xlu0 %v785, 8
        %v988 = vpop.permute.xlu0 %987
        %989 = vrot.lane.b32.xlu0 %v786, 8
        %v990 = vpop.permute.xlu0 %989
        %991 = vrot.lane.b32.xlu0 %v787, 8
        %v992 = vpop.permute.xlu0 %991
        %993 = vrot.lane.b32.xlu0 %v788, 8
        %v994 = vpop.permute.xlu0 %993
        %995 = vrot.lane.b32.xlu0 %v789, 8
        %v996 = vpop.permute.xlu0 %995
        %997 = vrot.lane.b32.xlu0 %v790, 8
        %v998 = vpop.permute.xlu0 %997
        %999 = vrot.lane.b32.xlu0 %v791, 8
        %v1000 = vpop.permute.xlu0 %999
        %1001 = vrot.lane.b32.xlu0 %v792, 8
        %v1002 = vpop.permute.xlu0 %1001
        %1003 = vrot.lane.b32.xlu0 %v793, 8
        %v1004 = vpop.permute.xlu0 %1003
        %1005 = vrot.lane.b32.xlu0 %v794, 8
        %v1006 = vpop.permute.xlu0 %1005
        %1007 = vrot.lane.b32.xlu0 %v795, 8
        %v1008 = vpop.permute.xlu0 %1007
        %1009 = vrot.lane.b32.xlu0 %v796, 8
        %v1010 = vpop.permute.xlu0 %1009
        %1011 = vrot.lane.b32.xlu0 %v797, 8
        %v1012 = vpop.permute.xlu0 %1011
        %1013 = vrot.lane.b32.xlu0 %v798, 8
        %v1014 = vpop.permute.xlu0 %1013
        %1015 = vrot.lane.b32.xlu0 %v799, 8
        %v1016 = vpop.permute.xlu0 %1015
        %1017 = vrot.lane.b32.xlu0 %v800, 8
        %v1018 = vpop.permute.xlu0 %1017
        %1019 = vrot.lane.b32.xlu0 %v801, 8
        %v1020 = vpop.permute.xlu0 %1019
        %1021 = vrot.lane.b32.xlu0 %v802, 8
        %v1022 = vpop.permute.xlu0 %1021
        %1023 = vrot.lane.b32.xlu0 %v803, 8
        %v1024 = vpop.permute.xlu0 %1023
        %1025 = vrot.lane.b32.xlu0 %v804, 8
        %v1026 = vpop.permute.xlu0 %1025
        %1027 = vrot.lane.b32.xlu0 %v805, 8
        %v1028 = vpop.permute.xlu0 %1027
        %1029 = vrot.lane.b32.xlu0 %v806, 8
        %v1030 = vpop.permute.xlu0 %1029
        %v1063 = vsel %vm214, %v711, %v840
        %v1064 = vsel %vm214, %v712, %v842
        %v1065 = vsel %vm214, %v713, %v844
        %v1066 = vsel %vm214, %v714, %v846
        %v1067 = vsel %vm214, %v715, %v848
        %v1068 = vsel %vm214, %v716, %v850
        %v1069 = vsel %vm214, %v717, %v852
        %v1070 = vsel %vm214, %v718, %v854
        %v1071 = vsel %vm214, %v719, %v856
        %v1072 = vsel %vm214, %v720, %v858
        %v1073 = vsel %vm214, %v721, %v860
        %v1074 = vsel %vm214, %v722, %v862
        %v1075 = vsel %vm214, %v723, %v864
        %v1076 = vsel %vm214, %v724, %v866
        %v1077 = vsel %vm214, %v725, %v868
        %v1078 = vsel %vm214, %v726, %v870
        %v1079 = vsel %vm214, %v727, %v872
        %v1080 = vsel %vm214, %v728, %v874
        %v1081 = vsel %vm214, %v729, %v876
        %v1082 = vsel %vm214, %v730, %v878
        %v1083 = vsel %vm214, %v731, %v880
        %v1084 = vsel %vm214, %v732, %v882
        %v1085 = vsel %vm214, %v733, %v884
        %v1086 = vsel %vm214, %v734, %v886
        %v1087 = vsel %vm214, %v735, %v888
        %v1088 = vsel %vm214, %v736, %v890
        %v1089 = vsel %vm214, %v737, %v892
        %v1090 = vsel %vm214, %v738, %v894
        %v1091 = vsel %vm214, %v739, %v896
        %v1092 = vsel %vm214, %v740, %v898
        %v1093 = vsel %vm214, %v741, %v900
        %v1094 = vsel %vm214, %v742, %v902
        %v1095 = vsel %vm676, %v1063, %v968
        %v1096 = vsel %vm676, %v1064, %v970
        %v1097 = vsel %vm676, %v1065, %v972
        %v1098 = vsel %vm676, %v1066, %v974
        %v1099 = vsel %vm676, %v1067, %v976
        %v1100 = vsel %vm676, %v1068, %v978
        %v1101 = vsel %vm676, %v1069, %v980
        %v1102 = vsel %vm676, %v1070, %v982
        %v1103 = vsel %vm676, %v1071, %v984
        %v1104 = vsel %vm676, %v1072, %v986
        %v1105 = vsel %vm676, %v1073, %v988
        %v1106 = vsel %vm676, %v1074, %v990
        %v1107 = vsel %vm676, %v1075, %v992
        %v1108 = vsel %vm676, %v1076, %v994
        %v1109 = vsel %vm676, %v1077, %v996
        %v1110 = vsel %vm676, %v1078, %v998
        %v1111 = vsel %vm676, %v1079, %v1000
        %v1112 = vsel %vm676, %v1080, %v1002
        %v1113 = vsel %vm676, %v1081, %v1004
        %v1114 = vsel %vm676, %v1082, %v1006
        %v1115 = vsel %vm676, %v1083, %v1008
        %v1116 = vsel %vm676, %v1084, %v1010
        %v1117 = vsel %vm676, %v1085, %v1012
        %v1118 = vsel %vm676, %v1086, %v1014
        %v1119 = vsel %vm676, %v1087, %v1016
        %v1120 = vsel %vm676, %v1088, %v1018
        %v1121 = vsel %vm676, %v1089, %v1020
        %v1122 = vsel %vm676, %v1090, %v1022
        %v1123 = vsel %vm676, %v1091, %v1024
        %v1124 = vsel %vm676, %v1092, %v1026
        %v1125 = vsel %vm676, %v1093, %v1028
        %v1126 = vsel %vm676, %v1094, %v1030
        %v1127 = vld [vmem:[%s1 + $0xc] sm:$0xff]
        %v1128 = vld [vmem:[%s1 + $0x14] sm:$0xf]
        %vm1129 = vcmask 97280
        %v1131 = vsel %vm1129, %v1095, 0
        %v1134 = vsel %vm1129, %v1096, 0
        %v1137 = vsel %vm1129, %v1097, 0
        %v1140 = vsel %vm1129, %v1098, 0
        %v1143 = vsel %vm1129, %v1099, 0
        %v1146 = vsel %vm1129, %v1100, 0
        %v1149 = vsel %vm1129, %v1101, 0
        %v1152 = vsel %vm1129, %v1102, 0
        %v1155 = vsel %vm1129, %v1103, 0
        %v1158 = vsel %vm1129, %v1104, 0
        %v1161 = vsel %vm1129, %v1105, 0
        %v1164 = vsel %vm1129, %v1106, 0
        %v1167 = vsel %vm1129, %v1107, 0
        %v1170 = vsel %vm1129, %v1108, 0
        %v1173 = vsel %vm1129, %v1109, 0
        %v1176 = vsel %vm1129, %v1110, 0
        %v1179 = vsel %vm1129, %v1111, 0
        %v1182 = vsel %vm1129, %v1112, 0
        %v1185 = vsel %vm1129, %v1113, 0
        %v1188 = vsel %vm1129, %v1114, 0
        %v1191 = vsel %vm1129, %v1115, 0
        %v1194 = vsel %vm1129, %v1116, 0
        %v1197 = vsel %vm1129, %v1117, 0
        %v1200 = vsel %vm1129, %v1118, 0
        %v1203 = vsel %vm1129, %v1119, 0
        %v1206 = vsel %vm1129, %v1120, 0
        %v1209 = vsel %vm1129, %v1121, 0
        %v1212 = vsel %vm1129, %v1122, 0
        %v1215 = vsel %vm1129, %v1123, 0
        %v1218 = vsel %vm1129, %v1124, 0
        %v1221 = vsel %vm1129, %v1125, 0
        %v1224 = vsel %vm1129, %v1126, 0
        %vm1226 = vcmask 1043456
        %v1228 = vsel %vm1226, %v1128, 0
        %1230 = vmatprep.subr.mxu0 0.0
        %1231 = vmatpush1.msra.mxu0 %v1127
        %1232 = vmatprep.subr.mxu0 0.0
        %1233 = vmatpush1.msra.mxu0 %v1228
        %1234 = vmatprep.subr.mxu0 0.0
        %1235 = vmatpush1.msra.mxu0 0.0
        %1236 = vmatprep.subr.mxu0 0.0
        %1237 = vmatpush1.msra.mxu0 0.0
        %1238 = vmatprep.subr.mxu0 0.0
        %1239 = vmatpush1.msra.mxu0 0.0
        %1240 = vmatprep.subr.mxu0 0.0
        %1241 = vmatpush1.msra.mxu0 0.0
        %1242 = vmatprep.subr.mxu0 0.0
        %1243 = vmatpush1.msra.mxu0 0.0
        %1244 = vmatprep.subr.mxu0 0.0
        %1245 = vmatpush1.msra.mxu0 0.0
        %1246 = vmatprep.subr.mxu0 0.0
        %1247 = vmatpush1.msra.mxu0 0.0
        %1248 = vmatprep.subr.mxu0 0.0
        %1249 = vmatpush1.msra.mxu0 0.0
        %1250 = vmatprep.subr.mxu0 0.0
        %1251 = vmatpush1.msra.mxu0 0.0
        %1252 = vmatprep.subr.mxu0 0.0
        %1253 = vmatpush1.msra.mxu0 0.0
        %1254 = vmatprep.subr.mxu0 0.0
        %1255 = vmatpush1.msra.mxu0 0.0
        %1256 = vmatprep.subr.mxu0 0.0
        %1257 = vmatpush1.msra.mxu0 0.0
        %1258 = vmatprep.subr.mxu0 0.0
        %1259 = vmatpush1.msra.mxu0 0.0
        %1260 = vmatprep.subr.mxu0 0.0
        %1261 = vmatpush1.msra.mxu0 0.0
        %1262 = vmatprep.subr.mxu0 0.0
        %1263 = vmatpush1.msra.mxu0 0.0
        %1264 = vmatprep.subr.mxu0 0.0
        %1265 = vmatpush1.msra.mxu0 0.0
        %1266 = vmatprep.subr.mxu0 0.0
        %1267 = vmatpush1.msra.mxu0 0.0
        %1268 = vmatprep.subr.mxu0 0.0
        %1269 = vmatpush1.msra.mxu0 0.0
        %1270 = vmatprep.subr.mxu0 0.0
        %1271 = vmatpush1.msra.mxu0 0.0
        %1272 = vmatprep.subr.mxu0 0.0
        %1273 = vmatpush1.msra.mxu0 0.0
        %1274 = vmatprep.subr.mxu0 0.0
        %1275 = vmatpush1.msra.mxu0 0.0
        %1276 = vmatprep.subr.mxu0 0.0
        %1277 = vmatpush1.msra.mxu0 0.0
        %1278 = vmatprep.subr.mxu0 0.0
        %1279 = vmatpush1.msra.mxu0 0.0
        %1280 = vmatprep.subr.mxu0 0.0
        %1281 = vmatpush1.msra.mxu0 0.0
        %1282 = vmatprep.subr.mxu0 0.0
        %1283 = vmatpush1.msra.mxu0 0.0
        %1284 = vmatprep.subr.mxu0 0.0
        %1285 = vmatpush1.msra.mxu0 0.0
        %1286 = vmatprep.subr.mxu0 0.0
        %1287 = vmatpush1.msra.mxu0 0.0
        %1288 = vmatprep.subr.mxu0 0.0
        %1289 = vmatpush1.msra.mxu0 0.0
        %1290 = vmatprep.subr.mxu0 0.0
        %1291 = vmatpush1.msra.mxu0 0.0
        %1292 = vmatprep.subr.mxu0 0.0
        %1293 = vmatpush1.msra.mxu0 0.0
        %1294 = vmatprep.mubr.f32.mxu0 0.0
        %1295 = vmatmul.mubr.f32.gmra.mrb[0].mxu0 %v1131
        %v1296 = vpop.f32.mrb[0].mxu0
        %v1297 = vadd.f32 0.0, %v1296
        %v1298 = vpop.f32.mrb[0].mxu0
        %1299 = vmatprep.mubr.f32.mxu0 0.0
        %1300 = vmatmul.mubr.f32.gmra.mrb[0].mxu0 %v1134
        %v1301 = vpop.f32.mrb[0].mxu0
        %v1302 = vadd.f32 0.0, %v1301
        %v1303 = vpop.f32.mrb[0].mxu0
        %1304 = vmatprep.mubr.f32.mxu0 0.0
        %1305 = vmatmul.mubr.f32.gmra.mrb[0].mxu0 %v1137
        %v1306 = vpop.f32.mrb[0].mxu0
        %v1307 = vadd.f32 0.0, %v1306
        %v1308 = vpop.f32.mrb[0].mxu0
        %1309 = vmatprep.mubr.f32.mxu0 0.0
        %1310 = vmatmul.mubr.f32.gmra.mrb[0].mxu0 %v1140
        %v1311 = vpop.f32.mrb[0].mxu0
        %v1312 = vadd.f32 0.0, %v1311
        %v1313 = vpop.f32.mrb[0].mxu0
        %1314 = vmatprep.mubr.f32.mxu0 0.0
        %1315 = vmatmul.mubr.f32.gmra.mrb[0].mxu0 %v1143
        %v1316 = vpop.f32.mrb[0].mxu0
        %v1317 = vadd.f32 0.0, %v1316
        %v1318 = vpop.f32.mrb[0].mxu0
        %1319 = vmatprep.mubr.f32.mxu0 0.0
        %1320 = vmatmul.mubr.f32.gmra.mrb[0].mxu0 %v1146
        %v1321 = vpop.f32.mrb[0].mxu0
        %v1322 = vadd.f32 0.0, %v1321
        %v1323 = vpop.f32.mrb[0].mxu0
        %1324 = vmatprep.mubr.f32.mxu0 0.0
        %1325 = vmatmul.mubr.f32.gmra.mrb[0].mxu0 %v1149
        %v1326 = vpop.f32.mrb[0].mxu0
        %v1327 = vadd.f32 0.0, %v1326
        %v1328 = vpop.f32.mrb[0].mxu0
        %1329 = vmatprep.mubr.f32.mxu0 0.0
        %1330 = vmatmul.mubr.f32.gmra.mrb[0].mxu0 %v1152
        %v1331 = vpop.f32.mrb[0].mxu0
        %v1332 = vadd.f32 0.0, %v1331
        %v1333 = vpop.f32.mrb[0].mxu0
        %1334 = vmatprep.mubr.f32.mxu0 0.0
        %1335 = vmatmul.mubr.f32.gmra.mrb[0].mxu0 %v1155
        %v1336 = vpop.f32.mrb[0].mxu0
        %v1337 = vadd.f32 0.0, %v1336
        %v1338 = vpop.f32.mrb[0].mxu0
        %1339 = vmatprep.mubr.f32.mxu0 0.0
        %1340 = vmatmul.mubr.f32.gmra.mrb[0].mxu0 %v1158
        %v1341 = vpop.f32.mrb[0].mxu0
        %v1342 = vadd.f32 0.0, %v1341
        %v1343 = vpop.f32.mrb[0].mxu0
        %1344 = vmatprep.mubr.f32.mxu0 0.0
        %1345 = vmatmul.mubr.f32.gmra.mrb[0].mxu0 %v1161
        %v1346 = vpop.f32.mrb[0].mxu0
        %v1347 = vadd.f32 0.0, %v1346
        %v1348 = vpop.f32.mrb[0].mxu0
        %1349 = vmatprep.mubr.f32.mxu0 0.0
        %1350 = vmatmul.mubr.f32.gmra.mrb[0].mxu0 %v1164
        %v1351 = vpop.f32.mrb[0].mxu0
        %v1352 = vadd.f32 0.0, %v1351
        %v1353 = vpop.f32.mrb[0].mxu0
        %1354 = vmatprep.mubr.f32.mxu0 0.0
        %1355 = vmatmul.mubr.f32.gmra.mrb[0].mxu0 %v1167
        %v1356 = vpop.f32.mrb[0].mxu0
        %v1357 = vadd.f32 0.0, %v1356
        %v1358 = vpop.f32.mrb[0].mxu0
        %1359 = vmatprep.mubr.f32.mxu0 0.0
        %1360 = vmatmul.mubr.f32.gmra.mrb[0].mxu0 %v1170
        %v1361 = vpop.f32.mrb[0].mxu0
        %v1362 = vadd.f32 0.0, %v1361
        %v1363 = vpop.f32.mrb[0].mxu0
        %1364 = vmatprep.mubr.f32.mxu0 0.0
        %1365 = vmatmul.mubr.f32.gmra.mrb[0].mxu0 %v1173
        %v1366 = vpop.f32.mrb[0].mxu0
        %v1367 = vadd.f32 0.0, %v1366
        %v1368 = vpop.f32.mrb[0].mxu0
        %1369 = vmatprep.mubr.f32.mxu0 0.0
        %1370 = vmatmul.mubr.f32.gmra.mrb[0].mxu0 %v1176
        %v1371 = vpop.f32.mrb[0].mxu0
        %v1372 = vadd.f32 0.0, %v1371
        %v1373 = vpop.f32.mrb[0].mxu0
        %1374 = vmatprep.mubr.f32.mxu0 0.0
        %1375 = vmatmul.mubr.f32.gmra.mrb[0].mxu0 %v1179
        %v1376 = vpop.f32.mrb[0].mxu0
        %v1377 = vadd.f32 0.0, %v1376
        %v1378 = vpop.f32.mrb[0].mxu0
        %1379 = vmatprep.mubr.f32.mxu0 0.0
        %1380 = vmatmul.mubr.f32.gmra.mrb[0].mxu0 %v1182
        %v1381 = vpop.f32.mrb[0].mxu0
        %v1382 = vadd.f32 0.0, %v1381
        %v1383 = vpop.f32.mrb[0].mxu0
        %1384 = vmatprep.mubr.f32.mxu0 0.0
        %1385 = vmatmul.mubr.f32.gmra.mrb[0].mxu0 %v1185
        %v1386 = vpop.f32.mrb[0].mxu0
        %v1387 = vadd.f32 0.0, %v1386
        %v1388 = vpop.f32.mrb[0].mxu0
        %1389 = vmatprep.mubr.f32.mxu0 0.0
        %1390 = vmatmul.mubr.f32.gmra.mrb[0].mxu0 %v1188
        %v1391 = vpop.f32.mrb[0].mxu0
        %v1392 = vadd.f32 0.0, %v1391
        %v1393 = vpop.f32.mrb[0].mxu0
        %1394 = vmatprep.mubr.f32.mxu0 0.0
        %1395 = vmatmul.mubr.f32.gmra.mrb[0].mxu0 %v1191
        %v1396 = vpop.f32.mrb[0].mxu0
        %v1397 = vadd.f32 0.0, %v1396
        %v1398 = vpop.f32.mrb[0].mxu0
        %1399 = vmatprep.mubr.f32.mxu0 0.0
        %1400 = vmatmul.mubr.f32.gmra.mrb[0].mxu0 %v1194
        %v1401 = vpop.f32.mrb[0].mxu0
        %v1402 = vadd.f32 0.0, %v1401
        %v1403 = vpop.f32.mrb[0].mxu0
        %1404 = vmatprep.mubr.f32.mxu0 0.0
        %1405 = vmatmul.mubr.f32.gmra.mrb[0].mxu0 %v1197
        %v1406 = vpop.f32.mrb[0].mxu0
        %v1407 = vadd.f32 0.0, %v1406
        %v1408 = vpop.f32.mrb[0].mxu0
        %1409 = vmatprep.mubr.f32.mxu0 0.0
        %1410 = vmatmul.mubr.f32.gmra.mrb[0].mxu0 %v1200
        %v1411 = vpop.f32.mrb[0].mxu0
        %v1412 = vadd.f32 0.0, %v1411
        %v1413 = vpop.f32.mrb[0].mxu0
        %1414 = vmatprep.mubr.f32.mxu0 0.0
        %1415 = vmatmul.mubr.f32.gmra.mrb[0].mxu0 %v1203
        %v1416 = vpop.f32.mrb[0].mxu0
        %v1417 = vadd.f32 0.0, %v1416
        %v1418 = vpop.f32.mrb[0].mxu0
        %1419 = vmatprep.mubr.f32.mxu0 0.0
        %1420 = vmatmul.mubr.f32.gmra.mrb[0].mxu0 %v1206
        %v1421 = vpop.f32.mrb[0].mxu0
        %v1422 = vadd.f32 0.0, %v1421
        %v1423 = vpop.f32.mrb[0].mxu0
        %1424 = vmatprep.mubr.f32.mxu0 0.0
        %1425 = vmatmul.mubr.f32.gmra.mrb[0].mxu0 %v1209
        %v1426 = vpop.f32.mrb[0].mxu0
        %v1427 = vadd.f32 0.0, %v1426
        %v1428 = vpop.f32.mrb[0].mxu0
        %1429 = vmatprep.mubr.f32.mxu0 0.0
        %1430 = vmatmul.mubr.f32.gmra.mrb[0].mxu0 %v1212
        %v1431 = vpop.f32.mrb[0].mxu0
        %v1432 = vadd.f32 0.0, %v1431
        %v1433 = vpop.f32.mrb[0].mxu0
        %1434 = vmatprep.mubr.f32.mxu0 0.0
        %1435 = vmatmul.mubr.f32.gmra.mrb[0].mxu0 %v1215
        %v1436 = vpop.f32.mrb[0].mxu0
        %v1437 = vadd.f32 0.0, %v1436
        %v1438 = vpop.f32.mrb[0].mxu0
        %1439 = vmatprep.mubr.f32.mxu0 0.0
        %1440 = vmatmul.mubr.f32.gmra.mrb[0].mxu0 %v1218
        %v1441 = vpop.f32.mrb[0].mxu0
        %v1442 = vadd.f32 0.0, %v1441
        %v1443 = vpop.f32.mrb[0].mxu0
        %1444 = vmatprep.mubr.f32.mxu0 0.0
        %1445 = vmatmul.mubr.f32.gmra.mrb[0].mxu0 %v1221
        %v1446 = vpop.f32.mrb[0].mxu0
        %v1447 = vadd.f32 0.0, %v1446
        %v1448 = vpop.f32.mrb[0].mxu0
        %1449 = vmatprep.mubr.f32.mxu0 0.0
        %1450 = vmatmul.mubr.f32.gmra.mrb[0].mxu0 %v1224
        %v1451 = vpop.f32.mrb[0].mxu0
        %v1452 = vadd.f32 0.0, %v1451
        %v1453 = vpop.f32.mrb[0].mxu0
        %1454 = vdwg.mxu0
        %v1456 = vsel %vm1129, %v677, 0
        %v1459 = vsel %vm1129, %v678, 0
        %v1462 = vsel %vm1129, %v679, 0
        %v1465 = vsel %vm1129, %v680, 0
        %v1468 = vsel %vm1129, %v681, 0
        %v1471 = vsel %vm1129, %v682, 0
        %v1474 = vsel %vm1129, %v683, 0
        %v1477 = vsel %vm1129, %v684, 0
        %v1480 = vsel %vm1129, %v685, 0
        %v1483 = vsel %vm1129, %v686, 0
        %v1486 = vsel %vm1129, %v687, 0
        %v1489 = vsel %vm1129, %v688, 0
        %v1492 = vsel %vm1129, %v689, 0
        %v1495 = vsel %vm1129, %v690, 0
        %v1498 = vsel %vm1129, %v691, 0
        %v1501 = vsel %vm1129, %v692, 0
        %v1504 = vsel %vm1129, %v693, 0
        %v1507 = vsel %vm1129, %v694, 0
        %v1510 = vsel %vm1129, %v695, 0
        %v1513 = vsel %vm1129, %v696, 0
        %v1516 = vsel %vm1129, %v697, 0
        %v1519 = vsel %vm1129, %v698, 0
        %v1522 = vsel %vm1129, %v699, 0
        %v1525 = vsel %vm1129, %v700, 0
        %v1528 = vsel %vm1129, %v701, 0
        %v1531 = vsel %vm1129, %v702, 0
        %v1534 = vsel %vm1129, %v703, 0
        %v1537 = vsel %vm1129, %v704, 0
        %v1540 = vsel %vm1129, %v705, 0
        %v1543 = vsel %vm1129, %v706, 0
        %v1546 = vsel %vm1129, %v707, 0
        %v1549 = vsel %vm1129, %v708, 0
        %v1552 = vsel %vm1226, %v710, 0
        %1554 = vmatprep.subr.mxu0 0.0
        %1555 = vmatpush1.msra.mxu0 %v709
        %1556 = vmatprep.subr.mxu0 0.0
        %1557 = vmatpush1.msra.mxu0 %v1552
        %1558 = vmatprep.subr.mxu0 0.0
        %1559 = vmatpush1.msra.mxu0 0.0
        %1560 = vmatprep.subr.mxu0 0.0
        %1561 = vmatpush1.msra.mxu0 0.0
        %1562 = vmatprep.subr.mxu0 0.0
        %1563 = vmatpush1.msra.mxu0 0.0
        %1564 = vmatprep.subr.mxu0 0.0
        %1565 = vmatpush1.msra.mxu0 0.0
        %1566 = vmatprep.subr.mxu0 0.0
        %1567 = vmatpush1.msra.mxu0 0.0
        %1568 = vmatprep.subr.mxu0 0.0
        %1569 = vmatpush1.msra.mxu0 0.0
        %1570 = vmatprep.subr.mxu0 0.0
        %1571 = vmatpush1.msra.mxu0 0.0
        %1572 = vmatprep.subr.mxu0 0.0
        %1573 = vmatpush1.msra.mxu0 0.0
        %1574 = vmatprep.subr.mxu0 0.0
        %1575 = vmatpush1.msra.mxu0 0.0
        %1576 = vmatprep.subr.mxu0 0.0
        %1577 = vmatpush1.msra.mxu0 0.0
        %1578 = vmatprep.subr.mxu0 0.0
        %1579 = vmatpush1.msra.mxu0 0.0
        %1580 = vmatprep.subr.mxu0 0.0
        %1581 = vmatpush1.msra.mxu0 0.0
        %1582 = vmatprep.subr.mxu0 0.0
        %1583 = vmatpush1.msra.mxu0 0.0
        %1584 = vmatprep.subr.mxu0 0.0
        %1585 = vmatpush1.msra.mxu0 0.0
        %1586 = vmatprep.subr.mxu0 0.0
        %1587 = vmatpush1.msra.mxu0 0.0
        %1588 = vmatprep.subr.mxu0 0.0
        %1589 = vmatpush1.msra.mxu0 0.0
        %1590 = vmatprep.subr.mxu0 0.0
        %1591 = vmatpush1.msra.mxu0 0.0
        %1592 = vmatprep.subr.mxu0 0.0
        %1593 = vmatpush1.msra.mxu0 0.0
        %1594 = vmatprep.subr.mxu0 0.0
        %1595 = vmatpush1.msra.mxu0 0.0
        %1596 = vmatprep.subr.mxu0 0.0
        %1597 = vmatpush1.msra.mxu0 0.0
        %1598 = vmatprep.subr.mxu0 0.0
        %1599 = vmatpush1.msra.mxu0 0.0
        %1600 = vmatprep.subr.mxu0 0.0
        %1601 = vmatpush1.msra.mxu0 0.0
        %1602 = vmatprep.subr.mxu0 0.0
        %1603 = vmatpush1.msra.mxu0 0.0
        %1604 = vmatprep.subr.mxu0 0.0
        %1605 = vmatpush1.msra.mxu0 0.0
        %1606 = vmatprep.subr.mxu0 0.0
        %1607 = vmatpush1.msra.mxu0 0.0
        %1608 = vmatprep.subr.mxu0 0.0
        %1609 = vmatpush1.msra.mxu0 0.0
        %1610 = vmatprep.subr.mxu0 0.0
        %1611 = vmatpush1.msra.mxu0 0.0
        %1612 = vmatprep.subr.mxu0 0.0
        %1613 = vmatpush1.msra.mxu0 0.0
        %1614 = vmatprep.subr.mxu0 0.0
        %1615 = vmatpush1.msra.mxu0 0.0
        %1616 = vmatprep.subr.mxu0 0.0
        %1617 = vmatpush1.msra.mxu0 0.0
        %1618 = vmatprep.mubr.f32.mxu0 0.0
        %1619 = vmatmul.mubr.f32.gmra.mrb[0].mxu0 %v1456
        %v1620 = vpop.f32.mrb[0].mxu0
        %v1621 = vadd.f32 %v1297, %v1620
        %v1622 = vpop.f32.mrb[0].mxu0
        %1623 = vmatprep.mubr.f32.mxu0 0.0
        %1624 = vmatmul.mubr.f32.gmra.mrb[0].mxu0 %v1459
        %v1625 = vpop.f32.mrb[0].mxu0
        %v1626 = vadd.f32 %v1302, %v1625
        %v1627 = vpop.f32.mrb[0].mxu0
        %1628 = vmatprep.mubr.f32.mxu0 0.0
        %1629 = vmatmul.mubr.f32.gmra.mrb[0].mxu0 %v1462
        %v1630 = vpop.f32.mrb[0].mxu0
        %v1631 = vadd.f32 %v1307, %v1630
        %v1632 = vpop.f32.mrb[0].mxu0
        %1633 = vmatprep.mubr.f32.mxu0 0.0
        %1634 = vmatmul.mubr.f32.gmra.mrb[0].mxu0 %v1465
        %v1635 = vpop.f32.mrb[0].mxu0
        %v1636 = vadd.f32 %v1312, %v1635
        %v1637 = vpop.f32.mrb[0].mxu0
        %1638 = vmatprep.mubr.f32.mxu0 0.0
        %1639 = vmatmul.mubr.f32.gmra.mrb[0].mxu0 %v1468
        %v1640 = vpop.f32.mrb[0].mxu0
        %v1641 = vadd.f32 %v1317, %v1640
        %v1642 = vpop.f32.mrb[0].mxu0
        %1643 = vmatprep.mubr.f32.mxu0 0.0
        %1644 = vmatmul.mubr.f32.gmra.mrb[0].mxu0 %v1471
        %v1645 = vpop.f32.mrb[0].mxu0
        %v1646 = vadd.f32 %v1322, %v1645
        %v1647 = vpop.f32.mrb[0].mxu0
        %1648 = vmatprep.mubr.f32.mxu0 0.0
        %1649 = vmatmul.mubr.f32.gmra.mrb[0].mxu0 %v1474
        %v1650 = vpop.f32.mrb[0].mxu0
        %v1651 = vadd.f32 %v1327, %v1650
        %v1652 = vpop.f32.mrb[0].mxu0
        %1653 = vmatprep.mubr.f32.mxu0 0.0
        %1654 = vmatmul.mubr.f32.gmra.mrb[0].mxu0 %v1477
        %v1655 = vpop.f32.mrb[0].mxu0
        %v1656 = vadd.f32 %v1332, %v1655
        %v1657 = vpop.f32.mrb[0].mxu0
        %1658 = vmatprep.mubr.f32.mxu0 0.0
        %1659 = vmatmul.mubr.f32.gmra.mrb[0].mxu0 %v1480
        %v1660 = vpop.f32.mrb[0].mxu0
        %v1661 = vadd.f32 %v1337, %v1660
        %v1662 = vpop.f32.mrb[0].mxu0
        %1663 = vmatprep.mubr.f32.mxu0 0.0
        %1664 = vmatmul.mubr.f32.gmra.mrb[0].mxu0 %v1483
        %v1665 = vpop.f32.mrb[0].mxu0
        %v1666 = vadd.f32 %v1342, %v1665
        %v1667 = vpop.f32.mrb[0].mxu0
        %1668 = vmatprep.mubr.f32.mxu0 0.0
        %1669 = vmatmul.mubr.f32.gmra.mrb[0].mxu0 %v1486
        %v1670 = vpop.f32.mrb[0].mxu0
        %v1671 = vadd.f32 %v1347, %v1670
        %v1672 = vpop.f32.mrb[0].mxu0
        %1673 = vmatprep.mubr.f32.mxu0 0.0
        %1674 = vmatmul.mubr.f32.gmra.mrb[0].mxu0 %v1489
        %v1675 = vpop.f32.mrb[0].mxu0
        %v1676 = vadd.f32 %v1352, %v1675
        %v1677 = vpop.f32.mrb[0].mxu0
        %1678 = vmatprep.mubr.f32.mxu0 0.0
        %1679 = vmatmul.mubr.f32.gmra.mrb[0].mxu0 %v1492
        %v1680 = vpop.f32.mrb[0].mxu0
        %v1681 = vadd.f32 %v1357, %v1680
        %v1682 = vpop.f32.mrb[0].mxu0
        %1683 = vmatprep.mubr.f32.mxu0 0.0
        %1684 = vmatmul.mubr.f32.gmra.mrb[0].mxu0 %v1495
        %v1685 = vpop.f32.mrb[0].mxu0
        %v1686 = vadd.f32 %v1362, %v1685
        %v1687 = vpop.f32.mrb[0].mxu0
        %1688 = vmatprep.mubr.f32.mxu0 0.0
        %1689 = vmatmul.mubr.f32.gmra.mrb[0].mxu0 %v1498
        %v1690 = vpop.f32.mrb[0].mxu0
        %v1691 = vadd.f32 %v1367, %v1690
        %v1692 = vpop.f32.mrb[0].mxu0
        %1693 = vmatprep.mubr.f32.mxu0 0.0
        %1694 = vmatmul.mubr.f32.gmra.mrb[0].mxu0 %v1501
        %v1695 = vpop.f32.mrb[0].mxu0
        %v1696 = vadd.f32 %v1372, %v1695
        %v1697 = vpop.f32.mrb[0].mxu0
        %1698 = vmatprep.mubr.f32.mxu0 0.0
        %1699 = vmatmul.mubr.f32.gmra.mrb[0].mxu0 %v1504
        %v1700 = vpop.f32.mrb[0].mxu0
        %v1701 = vadd.f32 %v1377, %v1700
        %v1702 = vpop.f32.mrb[0].mxu0
        %1703 = vmatprep.mubr.f32.mxu0 0.0
        %1704 = vmatmul.mubr.f32.gmra.mrb[0].mxu0 %v1507
        %v1705 = vpop.f32.mrb[0].mxu0
        %v1706 = vadd.f32 %v1382, %v1705
        %v1707 = vpop.f32.mrb[0].mxu0
        %1708 = vmatprep.mubr.f32.mxu0 0.0
        %1709 = vmatmul.mubr.f32.gmra.mrb[0].mxu0 %v1510
        %v1710 = vpop.f32.mrb[0].mxu0
        %v1711 = vadd.f32 %v1387, %v1710
        %v1712 = vpop.f32.mrb[0].mxu0
        %1713 = vmatprep.mubr.f32.mxu0 0.0
        %1714 = vmatmul.mubr.f32.gmra.mrb[0].mxu0 %v1513
        %v1715 = vpop.f32.mrb[0].mxu0
        %v1716 = vadd.f32 %v1392, %v1715
        %v1717 = vpop.f32.mrb[0].mxu0
        %1718 = vmatprep.mubr.f32.mxu0 0.0
        %1719 = vmatmul.mubr.f32.gmra.mrb[0].mxu0 %v1516
        %v1720 = vpop.f32.mrb[0].mxu0
        %v1721 = vadd.f32 %v1397, %v1720
        %v1722 = vpop.f32.mrb[0].mxu0
        %1723 = vmatprep.mubr.f32.mxu0 0.0
        %1724 = vmatmul.mubr.f32.gmra.mrb[0].mxu0 %v1519
        %v1725 = vpop.f32.mrb[0].mxu0
        %v1726 = vadd.f32 %v1402, %v1725
        %v1727 = vpop.f32.mrb[0].mxu0
        %1728 = vmatprep.mubr.f32.mxu0 0.0
        %1729 = vmatmul.mubr.f32.gmra.mrb[0].mxu0 %v1522
        %v1730 = vpop.f32.mrb[0].mxu0
        %v1731 = vadd.f32 %v1407, %v1730
        %v1732 = vpop.f32.mrb[0].mxu0
        %1733 = vmatprep.mubr.f32.mxu0 0.0
        %1734 = vmatmul.mubr.f32.gmra.mrb[0].mxu0 %v1525
        %v1735 = vpop.f32.mrb[0].mxu0
        %v1736 = vadd.f32 %v1412, %v1735
        %v1737 = vpop.f32.mrb[0].mxu0
        %1738 = vmatprep.mubr.f32.mxu0 0.0
        %1739 = vmatmul.mubr.f32.gmra.mrb[0].mxu0 %v1528
        %v1740 = vpop.f32.mrb[0].mxu0
        %v1741 = vadd.f32 %v1417, %v1740
        %v1742 = vpop.f32.mrb[0].mxu0
        %1743 = vmatprep.mubr.f32.mxu0 0.0
        %1744 = vmatmul.mubr.f32.gmra.mrb[0].mxu0 %v1531
        %v1745 = vpop.f32.mrb[0].mxu0
        %v1746 = vadd.f32 %v1422, %v1745
        %v1747 = vpop.f32.mrb[0].mxu0
        %1748 = vmatprep.mubr.f32.mxu0 0.0
        %1749 = vmatmul.mubr.f32.gmra.mrb[0].mxu0 %v1534
        %v1750 = vpop.f32.mrb[0].mxu0
        %v1751 = vadd.f32 %v1427, %v1750
        %v1752 = vpop.f32.mrb[0].mxu0
        %1753 = vmatprep.mubr.f32.mxu0 0.0
        %1754 = vmatmul.mubr.f32.gmra.mrb[0].mxu0 %v1537
        %v1755 = vpop.f32.mrb[0].mxu0
        %v1756 = vadd.f32 %v1432, %v1755
        %v1757 = vpop.f32.mrb[0].mxu0
        %1758 = vmatprep.mubr.f32.mxu0 0.0
        %1759 = vmatmul.mubr.f32.gmra.mrb[0].mxu0 %v1540
        %v1760 = vpop.f32.mrb[0].mxu0
        %v1761 = vadd.f32 %v1437, %v1760
        %v1762 = vpop.f32.mrb[0].mxu0
        %1763 = vmatprep.mubr.f32.mxu0 0.0
        %1764 = vmatmul.mubr.f32.gmra.mrb[0].mxu0 %v1543
        %v1765 = vpop.f32.mrb[0].mxu0
        %v1766 = vadd.f32 %v1442, %v1765
        %v1767 = vpop.f32.mrb[0].mxu0
        %1768 = vmatprep.mubr.f32.mxu0 0.0
        %1769 = vmatmul.mubr.f32.gmra.mrb[0].mxu0 %v1546
        %v1770 = vpop.f32.mrb[0].mxu0
        %v1771 = vadd.f32 %v1447, %v1770
        %v1772 = vpop.f32.mrb[0].mxu0
        %1773 = vmatprep.mubr.f32.mxu0 0.0
        %1774 = vmatmul.mubr.f32.gmra.mrb[0].mxu0 %v1549
        %v1775 = vpop.f32.mrb[0].mxu0
        %v1776 = vadd.f32 %v1452, %v1775
        %v1777 = vpop.f32.mrb[0].mxu0
        %1778 = vdwg.mxu0
        %s1779 = scalar_lea.vmem [#allocation2], 48
        %v1780 = vld [vmem:[%s1779] sm:$0xff]
        %v1781 = vld [vmem:[%s1779 + $0x8] sm:$0xff]
        %v1782 = vld [vmem:[%s1779 + $0x18] sm:$0xff]
        %v1783 = vld [vmem:[%s1779 + $0x20] sm:$0xff]
        %v1784 = vld [vmem:[%s1779 + $0x30] sm:$0xff]
        %v1785 = vld [vmem:[%s1779 + $0x38] sm:$0xff]
        %v1786 = vld [vmem:[%s1779 + $0x48] sm:$0xff]
        %v1787 = vld [vmem:[%s1779 + $0x50] sm:$0xff]
        %v1788 = vld [vmem:[%s1779 + $0x60] sm:$0xff]
        %v1789 = vld [vmem:[%s1779 + $0x68] sm:$0xff]
        %v1790 = vld [vmem:[%s1779 + $0x78] sm:$0xff]
        %v1791 = vld [vmem:[%s1779 + $0x80] sm:$0xff]
        %v1792 = vld [vmem:[%s1779 + $0x90] sm:$0xff]
        %v1793 = vld [vmem:[%s1779 + $0x98] sm:$0xff]
        %v1794 = vld [vmem:[%s1779 + $0xa8] sm:$0xff]
        %v1795 = vld [vmem:[%s1779 + $0xb0] sm:$0xff]
        %v1796 = vld [vmem:[%s1779 + $0xc0] sm:$0xff]
        %v1797 = vld [vmem:[%s1779 + $0xc8] sm:$0xff]
        %v1798 = vld [vmem:[%s1779 + $0xd8] sm:$0xff]
        %v1799 = vld [vmem:[%s1779 + $0xe0] sm:$0xff]
        %v1800 = vld [vmem:[%s1779 + $0xf0] sm:$0xff]
        %v1801 = vld [vmem:[%s1779 + $0xf8] sm:$0xff]
        %v1802 = vld [vmem:[%s1779 + $0x108] sm:$0xff]
        %v1803 = vld [vmem:[%s1779 + $0x110] sm:$0xff]
        %v1804 = vld [vmem:[%s1779 + $0x120] sm:$0xff]
        %v1805 = vld [vmem:[%s1779 + $0x128] sm:$0xff]
        %v1806 = vld [vmem:[%s1779 + $0x138] sm:$0xff]
        %v1807 = vld [vmem:[%s1779 + $0x140] sm:$0xff]
        %v1808 = vld [vmem:[%s1779 + $0x150] sm:$0xff]
        %v1809 = vld [vmem:[%s1779 + $0x158] sm:$0xff]
        %v1810 = vld [vmem:[%s1779 + $0x168] sm:$0xff]
        %v1811 = vld [vmem:[%s1779 + $0x170] sm:$0xff]
        %v1812 = vld [vmem:[%s1779 + $0x1] sm:$0xff]
        %v1813 = vld [vmem:[%s1779 + $0x9] sm:$0xff]
        %v1814 = vld [vmem:[%s1779 + $0x19] sm:$0xff]
        %v1815 = vld [vmem:[%s1779 + $0x21] sm:$0xff]
        %v1816 = vld [vmem:[%s1779 + $0x31] sm:$0xff]
        %v1817 = vld [vmem:[%s1779 + $0x39] sm:$0xff]
        %v1818 = vld [vmem:[%s1779 + $0x49] sm:$0xff]
        %v1819 = vld [vmem:[%s1779 + $0x51] sm:$0xff]
        %v1820 = vld [vmem:[%s1779 + $0x61] sm:$0xff]
        %v1821 = vld [vmem:[%s1779 + $0x69] sm:$0xff]
        %v1822 = vld [vmem:[%s1779 + $0x79] sm:$0xff]
        %v1823 = vld [vmem:[%s1779 + $0x81] sm:$0xff]
        %v1824 = vld [vmem:[%s1779 + $0x91] sm:$0xff]
        %v1825 = vld [vmem:[%s1779 + $0x99] sm:$0xff]
        %v1826 = vld [vmem:[%s1779 + $0xa9] sm:$0xff]
        %v1827 = vld [vmem:[%s1779 + $0xb1] sm:$0xff]
        %v1828 = vld [vmem:[%s1779 + $0xc1] sm:$0xff]
        %v1829 = vld [vmem:[%s1779 + $0xc9] sm:$0xff]
        %v1830 = vld [vmem:[%s1779 + $0xd9] sm:$0xff]
        %v1831 = vld [vmem:[%s1779 + $0xe1] sm:$0xff]
        %v1832 = vld [vmem:[%s1779 + $0xf1] sm:$0xff]
        %v1833 = vld [vmem:[%s1779 + $0xf9] sm:$0xff]
        %v1834 = vld [vmem:[%s1779 + $0x109] sm:$0xff]
        %v1835 = vld [vmem:[%s1779 + $0x111] sm:$0xff]
        %v1836 = vld [vmem:[%s1779 + $0x121] sm:$0xff]
        %v1837 = vld [vmem:[%s1779 + $0x129] sm:$0xff]
        %v1838 = vld [vmem:[%s1779 + $0x139] sm:$0xff]
        %v1839 = vld [vmem:[%s1779 + $0x141] sm:$0xff]
        %v1840 = vld [vmem:[%s1779 + $0x151] sm:$0xff]
        %v1841 = vld [vmem:[%s1779 + $0x159] sm:$0xff]
        %v1842 = vld [vmem:[%s1779 + $0x169] sm:$0xff]
        %v1843 = vld [vmem:[%s1779 + $0x171] sm:$0xff]
        %v1844 = vld [vmem:[%s1779 + $0x2] sm:$0xff]
        %v1845 = vld [vmem:[%s1779 + $0xa] sm:$0xff]
        %v1846 = vld [vmem:[%s1779 + $0x1a] sm:$0xff]
        %v1847 = vld [vmem:[%s1779 + $0x22] sm:$0xff]
        %v1848 = vld [vmem:[%s1779 + $0x32] sm:$0xff]
        %v1849 = vld [vmem:[%s1779 + $0x3a] sm:$0xff]
        %v1850 = vld [vmem:[%s1779 + $0x4a] sm:$0xff]
        %v1851 = vld [vmem:[%s1779 + $0x52] sm:$0xff]
        %v1852 = vld [vmem:[%s1779 + $0x62] sm:$0xff]
        %v1853 = vld [vmem:[%s1779 + $0x6a] sm:$0xff]
        %v1854 = vld [vmem:[%s1779 + $0x7a] sm:$0xff]
        %v1855 = vld [vmem:[%s1779 + $0x82] sm:$0xff]
        %v1856 = vld [vmem:[%s1779 + $0x92] sm:$0xff]
        %v1857 = vld [vmem:[%s1779 + $0x9a] sm:$0xff]
        %v1858 = vld [vmem:[%s1779 + $0xaa] sm:$0xff]
        %v1859 = vld [vmem:[%s1779 + $0xb2] sm:$0xff]
        %v1860 = vld [vmem:[%s1779 + $0xc2] sm:$0xff]
        %v1861 = vld [vmem:[%s1779 + $0xca] sm:$0xff]
        %v1862 = vld [vmem:[%s1779 + $0xda] sm:$0xff]
        %v1863 = vld [vmem:[%s1779 + $0xe2] sm:$0xff]
        %v1864 = vld [vmem:[%s1779 + $0xf2] sm:$0xff]
        %v1865 = vld [vmem:[%s1779 + $0xfa] sm:$0xff]
        %v1866 = vld [vmem:[%s1779 + $0x10a] sm:$0xff]
        %v1867 = vld [vmem:[%s1779 + $0x112] sm:$0xff]
        %v1868 = vld [vmem:[%s1779 + $0x122] sm:$0xff]
        %v1869 = vld [vmem:[%s1779 + $0x12a] sm:$0xff]
        %v1870 = vld [vmem:[%s1779 + $0x13a] sm:$0xff]
        %v1871 = vld [vmem:[%s1779 + $0x142] sm:$0xff]
        %v1872 = vld [vmem:[%s1779 + $0x152] sm:$0xff]
        %v1873 = vld [vmem:[%s1779 + $0x15a] sm:$0xff]
        %v1874 = vld [vmem:[%s1779 + $0x16a] sm:$0xff]
        %v1875 = vld [vmem:[%s1779 + $0x172] sm:$0xff]
        %1908 = vrot.lane.b32.xlu0 %v1812, 4
        %v1909 = vpop.permute.xlu0 %1908
        %1910 = vrot.lane.b32.xlu0 %v1813, 4
        %v1911 = vpop.permute.xlu0 %1910
        %1912 = vrot.lane.b32.xlu0 %v1814, 4
        %v1913 = vpop.permute.xlu0 %1912
        %1914 = vrot.lane.b32.xlu0 %v1815, 4
        %v1915 = vpop.permute.xlu0 %1914
        %1916 = vrot.lane.b32.xlu0 %v1816, 4
        %v1917 = vpop.permute.xlu0 %1916
        %1918 = vrot.lane.b32.xlu0 %v1817, 4
        %v1919 = vpop.permute.xlu0 %1918
        %1920 = vrot.lane.b32.xlu0 %v1818, 4
        %v1921 = vpop.permute.xlu0 %1920
        %1922 = vrot.lane.b32.xlu0 %v1819, 4
        %v1923 = vpop.permute.xlu0 %1922
        %1924 = vrot.lane.b32.xlu0 %v1820, 4
        %v1925 = vpop.permute.xlu0 %1924
        %1926 = vrot.lane.b32.xlu0 %v1821, 4
        %v1927 = vpop.permute.xlu0 %1926
        %1928 = vrot.lane.b32.xlu0 %v1822, 4
        %v1929 = vpop.permute.xlu0 %1928
        %1930 = vrot.lane.b32.xlu0 %v1823, 4
        %v1931 = vpop.permute.xlu0 %1930
        %1932 = vrot.lane.b32.xlu0 %v1824, 4
        %v1933 = vpop.permute.xlu0 %1932
        %1934 = vrot.lane.b32.xlu0 %v1825, 4
        %v1935 = vpop.permute.xlu0 %1934
        %1936 = vrot.lane.b32.xlu0 %v1826, 4
        %v1937 = vpop.permute.xlu0 %1936
        %1938 = vrot.lane.b32.xlu0 %v1827, 4
        %v1939 = vpop.permute.xlu0 %1938
        %1940 = vrot.lane.b32.xlu0 %v1828, 4
        %v1941 = vpop.permute.xlu0 %1940
        %1942 = vrot.lane.b32.xlu0 %v1829, 4
        %v1943 = vpop.permute.xlu0 %1942
        %1944 = vrot.lane.b32.xlu0 %v1830, 4
        %v1945 = vpop.permute.xlu0 %1944
        %1946 = vrot.lane.b32.xlu0 %v1831, 4
        %v1947 = vpop.permute.xlu0 %1946
        %1948 = vrot.lane.b32.xlu0 %v1832, 4
        %v1949 = vpop.permute.xlu0 %1948
        %1950 = vrot.lane.b32.xlu0 %v1833, 4
        %v1951 = vpop.permute.xlu0 %1950
        %1952 = vrot.lane.b32.xlu0 %v1834, 4
        %v1953 = vpop.permute.xlu0 %1952
        %1954 = vrot.lane.b32.xlu0 %v1835, 4
        %v1955 = vpop.permute.xlu0 %1954
        %1956 = vrot.lane.b32.xlu0 %v1836, 4
        %v1957 = vpop.permute.xlu0 %1956
        %1958 = vrot.lane.b32.xlu0 %v1837, 4
        %v1959 = vpop.permute.xlu0 %1958
        %1960 = vrot.lane.b32.xlu0 %v1838, 4
        %v1961 = vpop.permute.xlu0 %1960
        %1962 = vrot.lane.b32.xlu0 %v1839, 4
        %v1963 = vpop.permute.xlu0 %1962
        %1964 = vrot.lane.b32.xlu0 %v1840, 4
        %v1965 = vpop.permute.xlu0 %1964
        %1966 = vrot.lane.b32.xlu0 %v1841, 4
        %v1967 = vpop.permute.xlu0 %1966
        %1968 = vrot.lane.b32.xlu0 %v1842, 4
        %v1969 = vpop.permute.xlu0 %1968
        %1970 = vrot.lane.b32.xlu0 %v1843, 4
        %v1971 = vpop.permute.xlu0 %1970
        %2036 = vrot.lane.b32.xlu0 %v1844, 8
        %v2037 = vpop.permute.xlu0 %2036
        %2038 = vrot.lane.b32.xlu0 %v1845, 8
        %v2039 = vpop.permute.xlu0 %2038
        %2040 = vrot.lane.b32.xlu0 %v1846, 8
        %v2041 = vpop.permute.xlu0 %2040
        %2042 = vrot.lane.b32.xlu0 %v1847, 8
        %v2043 = vpop.permute.xlu0 %2042
        %2044 = vrot.lane.b32.xlu0 %v1848, 8
        %v2045 = vpop.permute.xlu0 %2044
        %2046 = vrot.lane.b32.xlu0 %v1849, 8
        %v2047 = vpop.permute.xlu0 %2046
        %2048 = vrot.lane.b32.xlu0 %v1850, 8
        %v2049 = vpop.permute.xlu0 %2048
        %2050 = vrot.lane.b32.xlu0 %v1851, 8
        %v2051 = vpop.permute.xlu0 %2050
        %2052 = vrot.lane.b32.xlu0 %v1852, 8
        %v2053 = vpop.permute.xlu0 %2052
        %2054 = vrot.lane.b32.xlu0 %v1853, 8
        %v2055 = vpop.permute.xlu0 %2054
        %2056 = vrot.lane.b32.xlu0 %v1854, 8
        %v2057 = vpop.permute.xlu0 %2056
        %2058 = vrot.lane.b32.xlu0 %v1855, 8
        %v2059 = vpop.permute.xlu0 %2058
        %2060 = vrot.lane.b32.xlu0 %v1856, 8
        %v2061 = vpop.permute.xlu0 %2060
        %2062 = vrot.lane.b32.xlu0 %v1857, 8
        %v2063 = vpop.permute.xlu0 %2062
        %2064 = vrot.lane.b32.xlu0 %v1858, 8
        %v2065 = vpop.permute.xlu0 %2064
        %2066 = vrot.lane.b32.xlu0 %v1859, 8
        %v2067 = vpop.permute.xlu0 %2066
        %2068 = vrot.lane.b32.xlu0 %v1860, 8
        %v2069 = vpop.permute.xlu0 %2068
        %2070 = vrot.lane.b32.xlu0 %v1861, 8
        %v2071 = vpop.permute.xlu0 %2070
        %2072 = vrot.lane.b32.xlu0 %v1862, 8
        %v2073 = vpop.permute.xlu0 %2072
        %2074 = vrot.lane.b32.xlu0 %v1863, 8
        %v2075 = vpop.permute.xlu0 %2074
        %2076 = vrot.lane.b32.xlu0 %v1864, 8
        %v2077 = vpop.permute.xlu0 %2076
        %2078 = vrot.lane.b32.xlu0 %v1865, 8
        %v2079 = vpop.permute.xlu0 %2078
        %2080 = vrot.lane.b32.xlu0 %v1866, 8
        %v2081 = vpop.permute.xlu0 %2080
        %2082 = vrot.lane.b32.xlu0 %v1867, 8
        %v2083 = vpop.permute.xlu0 %2082
        %2084 = vrot.lane.b32.xlu0 %v1868, 8
        %v2085 = vpop.permute.xlu0 %2084
        %2086 = vrot.lane.b32.xlu0 %v1869, 8
        %v2087 = vpop.permute.xlu0 %2086
        %2088 = vrot.lane.b32.xlu0 %v1870, 8
        %v2089 = vpop.permute.xlu0 %2088
        %2090 = vrot.lane.b32.xlu0 %v1871, 8
        %v2091 = vpop.permute.xlu0 %2090
        %2092 = vrot.lane.b32.xlu0 %v1872, 8
        %v2093 = vpop.permute.xlu0 %2092
        %2094 = vrot.lane.b32.xlu0 %v1873, 8
        %v2095 = vpop.permute.xlu0 %2094
        %2096 = vrot.lane.b32.xlu0 %v1874, 8
        %v2097 = vpop.permute.xlu0 %2096
        %2098 = vrot.lane.b32.xlu0 %v1875, 8
        %v2099 = vpop.permute.xlu0 %2098
        %v2132 = vsel %vm214, %v1780, %v1909
        %v2133 = vsel %vm214, %v1781, %v1911
        %v2134 = vsel %vm214, %v1782, %v1913
        %v2135 = vsel %vm214, %v1783, %v1915
        %v2136 = vsel %vm214, %v1784, %v1917
        %v2137 = vsel %vm214, %v1785, %v1919
        %v2138 = vsel %vm214, %v1786, %v1921
        %v2139 = vsel %vm214, %v1787, %v1923
        %v2140 = vsel %vm214, %v1788, %v1925
        %v2141 = vsel %vm214, %v1789, %v1927
        %v2142 = vsel %vm214, %v1790, %v1929
        %v2143 = vsel %vm214, %v1791, %v1931
        %v2144 = vsel %vm214, %v1792, %v1933
        %v2145 = vsel %vm214, %v1793, %v1935
        %v2146 = vsel %vm214, %v1794, %v1937
        %v2147 = vsel %vm214, %v1795, %v1939
        %v2148 = vsel %vm214, %v1796, %v1941
        %v2149 = vsel %vm214, %v1797, %v1943
        %v2150 = vsel %vm214, %v1798, %v1945
        %v2151 = vsel %vm214, %v1799, %v1947
        %v2152 = vsel %vm214, %v1800, %v1949
        %v2153 = vsel %vm214, %v1801, %v1951
        %v2154 = vsel %vm214, %v1802, %v1953
        %v2155 = vsel %vm214, %v1803, %v1955
        %v2156 = vsel %vm214, %v1804, %v1957
        %v2157 = vsel %vm214, %v1805, %v1959
        %v2158 = vsel %vm214, %v1806, %v1961
        %v2159 = vsel %vm214, %v1807, %v1963
        %v2160 = vsel %vm214, %v1808, %v1965
        %v2161 = vsel %vm214, %v1809, %v1967
        %v2162 = vsel %vm214, %v1810, %v1969
        %v2163 = vsel %vm214, %v1811, %v1971
        %v2164 = vsel %vm676, %v2132, %v2037
        %v2165 = vsel %vm676, %v2133, %v2039
        %v2166 = vsel %vm676, %v2134, %v2041
        %v2167 = vsel %vm676, %v2135, %v2043
        %v2168 = vsel %vm676, %v2136, %v2045
        %v2169 = vsel %vm676, %v2137, %v2047
        %v2170 = vsel %vm676, %v2138, %v2049
        %v2171 = vsel %vm676, %v2139, %v2051
        %v2172 = vsel %vm676, %v2140, %v2053
        %v2173 = vsel %vm676, %v2141, %v2055
        %v2174 = vsel %vm676, %v2142, %v2057
        %v2175 = vsel %vm676, %v2143, %v2059
        %v2176 = vsel %vm676, %v2144, %v2061
        %v2177 = vsel %vm676, %v2145, %v2063
        %v2178 = vsel %vm676, %v2146, %v2065
        %v2179 = vsel %vm676, %v2147, %v2067
        %v2180 = vsel %vm676, %v2148, %v2069
        %v2181 = vsel %vm676, %v2149, %v2071
        %v2182 = vsel %vm676, %v2150, %v2073
        %v2183 = vsel %vm676, %v2151, %v2075
        %v2184 = vsel %vm676, %v2152, %v2077
        %v2185 = vsel %vm676, %v2153, %v2079
        %v2186 = vsel %vm676, %v2154, %v2081
        %v2187 = vsel %vm676, %v2155, %v2083
        %v2188 = vsel %vm676, %v2156, %v2085
        %v2189 = vsel %vm676, %v2157, %v2087
        %v2190 = vsel %vm676, %v2158, %v2089
        %v2191 = vsel %vm676, %v2159, %v2091
        %v2192 = vsel %vm676, %v2160, %v2093
        %v2193 = vsel %vm676, %v2161, %v2095
        %v2194 = vsel %vm676, %v2162, %v2097
        %v2195 = vsel %vm676, %v2163, %v2099
        %v2196 = vld [vmem:[%s1 + $0x18] sm:$0xff]
        %v2197 = vld [vmem:[%s1 + $0x20] sm:$0xf]
        %v2199 = vsel %vm1129, %v2164, 0
        %v2202 = vsel %vm1129, %v2165, 0
        %v2205 = vsel %vm1129, %v2166, 0
        %v2208 = vsel %vm1129, %v2167, 0
        %v2211 = vsel %vm1129, %v2168, 0
        %v2214 = vsel %vm1129, %v2169, 0
        %v2217 = vsel %vm1129, %v2170, 0
        %v2220 = vsel %vm1129, %v2171, 0
        %v2223 = vsel %vm1129, %v2172, 0
        %v2226 = vsel %vm1129, %v2173, 0
        %v2229 = vsel %vm1129, %v2174, 0
        %v2232 = vsel %vm1129, %v2175, 0
        %v2235 = vsel %vm1129, %v2176, 0
        %v2238 = vsel %vm1129, %v2177, 0
        %v2241 = vsel %vm1129, %v2178, 0
        %v2244 = vsel %vm1129, %v2179, 0
        %v2247 = vsel %vm1129, %v2180, 0
        %v2250 = vsel %vm1129, %v2181, 0
        %v2253 = vsel %vm1129, %v2182, 0
        %v2256 = vsel %vm1129, %v2183, 0
        %v2259 = vsel %vm1129, %v2184, 0
        %v2262 = vsel %vm1129, %v2185, 0
        %v2265 = vsel %vm1129, %v2186, 0
        %v2268 = vsel %vm1129, %v2187, 0
        %v2271 = vsel %vm1129, %v2188, 0
        %v2274 = vsel %vm1129, %v2189, 0
        %v2277 = vsel %vm1129, %v2190, 0
        %v2280 = vsel %vm1129, %v2191, 0
        %v2283 = vsel %vm1129, %v2192, 0
        %v2286 = vsel %vm1129, %v2193, 0
        %v2289 = vsel %vm1129, %v2194, 0
        %v2292 = vsel %vm1129, %v2195, 0
        %v2295 = vsel %vm1226, %v2197, 0
        %2297 = vmatprep.subr.mxu0 0.0
        %2298 = vmatpush1.msra.mxu0 %v2196
        %2299 = vmatprep.subr.mxu0 0.0
        %2300 = vmatpush1.msra.mxu0 %v2295
        %2301 = vmatprep.subr.mxu0 0.0
        %2302 = vmatpush1.msra.mxu0 0.0
        %2303 = vmatprep.subr.mxu0 0.0
        %2304 = vmatpush1.msra.mxu0 0.0
        %2305 = vmatprep.subr.mxu0 0.0
        %2306 = vmatpush1.msra.mxu0 0.0
        %2307 = vmatprep.subr.mxu0 0.0
        %2308 = vmatpush1.msra.mxu0 0.0
        %2309 = vmatprep.subr.mxu0 0.0
        %2310 = vmatpush1.msra.mxu0 0.0
        %2311 = vmatprep.subr.mxu0 0.0
        %2312 = vmatpush1.msra.mxu0 0.0
        %2313 = vmatprep.subr.mxu0 0.0
        %2314 = vmatpush1.msra.mxu0 0.0
        %2315 = vmatprep.subr.mxu0 0.0
        %2316 = vmatpush1.msra.mxu0 0.0
        %2317 = vmatprep.subr.mxu0 0.0
        %2318 = vmatpush1.msra.mxu0 0.0
        %2319 = vmatprep.subr.mxu0 0.0
        %2320 = vmatpush1.msra.mxu0 0.0
        %2321 = vmatprep.subr.mxu0 0.0
        %2322 = vmatpush1.msra.mxu0 0.0
        %2323 = vmatprep.subr.mxu0 0.0
        %2324 = vmatpush1.msra.mxu0 0.0
        %2325 = vmatprep.subr.mxu0 0.0
        %2326 = vmatpush1.msra.mxu0 0.0
        %2327 = vmatprep.subr.mxu0 0.0
        %2328 = vmatpush1.msra.mxu0 0.0
        %2329 = vmatprep.subr.mxu0 0.0
        %2330 = vmatpush1.msra.mxu0 0.0
        %2331 = vmatprep.subr.mxu0 0.0
        %2332 = vmatpush1.msra.mxu0 0.0
        %2333 = vmatprep.subr.mxu0 0.0
        %2334 = vmatpush1.msra.mxu0 0.0
        %2335 = vmatprep.subr.mxu0 0.0
        %2336 = vmatpush1.msra.mxu0 0.0
        %2337 = vmatprep.subr.mxu0 0.0
        %2338 = vmatpush1.msra.mxu0 0.0
        %2339 = vmatprep.subr.mxu0 0.0
        %2340 = vmatpush1.msra.mxu0 0.0
        %2341 = vmatprep.subr.mxu0 0.0
        %2342 = vmatpush1.msra.mxu0 0.0
        %2343 = vmatprep.subr.mxu0 0.0
        %2344 = vmatpush1.msra.mxu0 0.0
        %2345 = vmatprep.subr.mxu0 0.0
        %2346 = vmatpush1.msra.mxu0 0.0
        %2347 = vmatprep.subr.mxu0 0.0
        %2348 = vmatpush1.msra.mxu0 0.0
        %2349 = vmatprep.subr.mxu0 0.0
        %2350 = vmatpush1.msra.mxu0 0.0
        %2351 = vmatprep.subr.mxu0 0.0
        %2352 = vmatpush1.msra.mxu0 0.0
        %2353 = vmatprep.subr.mxu0 0.0
        %2354 = vmatpush1.msra.mxu0 0.0
        %2355 = vmatprep.subr.mxu0 0.0
        %2356 = vmatpush1.msra.mxu0 0.0
        %2357 = vmatprep.subr.mxu0 0.0
        %2358 = vmatpush1.msra.mxu0 0.0
        %2359 = vmatprep.subr.mxu0 0.0
        %2360 = vmatpush1.msra.mxu0 0.0
        %2361 = vmatprep.mubr.f32.mxu0 0.0
        %2362 = vmatmul.mubr.f32.gmra.mrb[0].mxu0 %v2199
        %v2363 = vpop.f32.mrb[0].mxu0
        %v2364 = vadd.f32 0.0, %v2363
        %v2365 = vpop.f32.mrb[0].mxu0
        %2366 = vmatprep.mubr.f32.mxu0 0.0
        %2367 = vmatmul.mubr.f32.gmra.mrb[0].mxu0 %v2202
        %v2368 = vpop.f32.mrb[0].mxu0
        %v2369 = vadd.f32 0.0, %v2368
        %v2370 = vpop.f32.mrb[0].mxu0
        %2371 = vmatprep.mubr.f32.mxu0 0.0
        %2372 = vmatmul.mubr.f32.gmra.mrb[0].mxu0 %v2205
        %v2373 = vpop.f32.mrb[0].mxu0
        %v2374 = vadd.f32 0.0, %v2373
        %v2375 = vpop.f32.mrb[0].mxu0
        %2376 = vmatprep.mubr.f32.mxu0 0.0
        %2377 = vmatmul.mubr.f32.gmra.mrb[0].mxu0 %v2208
        %v2378 = vpop.f32.mrb[0].mxu0
        %v2379 = vadd.f32 0.0, %v2378
        %v2380 = vpop.f32.mrb[0].mxu0
        %2381 = vmatprep.mubr.f32.mxu0 0.0
        %2382 = vmatmul.mubr.f32.gmra.mrb[0].mxu0 %v2211
        %v2383 = vpop.f32.mrb[0].mxu0
        %v2384 = vadd.f32 0.0, %v2383
        %v2385 = vpop.f32.mrb[0].mxu0
        %2386 = vmatprep.mubr.f32.mxu0 0.0
        %2387 = vmatmul.mubr.f32.gmra.mrb[0].mxu0 %v2214
        %v2388 = vpop.f32.mrb[0].mxu0
        %v2389 = vadd.f32 0.0, %v2388
        %v2390 = vpop.f32.mrb[0].mxu0
        %2391 = vmatprep.mubr.f32.mxu0 0.0
        %2392 = vmatmul.mubr.f32.gmra.mrb[0].mxu0 %v2217
        %v2393 = vpop.f32.mrb[0].mxu0
        %v2394 = vadd.f32 0.0, %v2393
        %v2395 = vpop.f32.mrb[0].mxu0
        %2396 = vmatprep.mubr.f32.mxu0 0.0
        %2397 = vmatmul.mubr.f32.gmra.mrb[0].mxu0 %v2220
        %v2398 = vpop.f32.mrb[0].mxu0
        %v2399 = vadd.f32 0.0, %v2398
        %v2400 = vpop.f32.mrb[0].mxu0
        %2401 = vmatprep.mubr.f32.mxu0 0.0
        %2402 = vmatmul.mubr.f32.gmra.mrb[0].mxu0 %v2223
        %v2403 = vpop.f32.mrb[0].mxu0
        %v2404 = vadd.f32 0.0, %v2403
        %v2405 = vpop.f32.mrb[0].mxu0
        %2406 = vmatprep.mubr.f32.mxu0 0.0
        %2407 = vmatmul.mubr.f32.gmra.mrb[0].mxu0 %v2226
        %v2408 = vpop.f32.mrb[0].mxu0
        %v2409 = vadd.f32 0.0, %v2408
        %v2410 = vpop.f32.mrb[0].mxu0
        %2411 = vmatprep.mubr.f32.mxu0 0.0
        %2412 = vmatmul.mubr.f32.gmra.mrb[0].mxu0 %v2229
        %v2413 = vpop.f32.mrb[0].mxu0
        %v2414 = vadd.f32 0.0, %v2413
        %v2415 = vpop.f32.mrb[0].mxu0
        %2416 = vmatprep.mubr.f32.mxu0 0.0
        %2417 = vmatmul.mubr.f32.gmra.mrb[0].mxu0 %v2232
        %v2418 = vpop.f32.mrb[0].mxu0
        %v2419 = vadd.f32 0.0, %v2418
        %v2420 = vpop.f32.mrb[0].mxu0
        %2421 = vmatprep.mubr.f32.mxu0 0.0
        %2422 = vmatmul.mubr.f32.gmra.mrb[0].mxu0 %v2235
        %v2423 = vpop.f32.mrb[0].mxu0
        %v2424 = vadd.f32 0.0, %v2423
        %v2425 = vpop.f32.mrb[0].mxu0
        %2426 = vmatprep.mubr.f32.mxu0 0.0
        %2427 = vmatmul.mubr.f32.gmra.mrb[0].mxu0 %v2238
        %v2428 = vpop.f32.mrb[0].mxu0
        %v2429 = vadd.f32 0.0, %v2428
        %v2430 = vpop.f32.mrb[0].mxu0
        %2431 = vmatprep.mubr.f32.mxu0 0.0
        %2432 = vmatmul.mubr.f32.gmra.mrb[0].mxu0 %v2241
        %v2433 = vpop.f32.mrb[0].mxu0
        %v2434 = vadd.f32 0.0, %v2433
        %v2435 = vpop.f32.mrb[0].mxu0
        %2436 = vmatprep.mubr.f32.mxu0 0.0
        %2437 = vmatmul.mubr.f32.gmra.mrb[0].mxu0 %v2244
        %v2438 = vpop.f32.mrb[0].mxu0
        %v2439 = vadd.f32 0.0, %v2438
        %v2440 = vpop.f32.mrb[0].mxu0
        %2441 = vmatprep.mubr.f32.mxu0 0.0
        %2442 = vmatmul.mubr.f32.gmra.mrb[0].mxu0 %v2247
        %v2443 = vpop.f32.mrb[0].mxu0
        %v2444 = vadd.f32 0.0, %v2443
        %v2445 = vpop.f32.mrb[0].mxu0
        %2446 = vmatprep.mubr.f32.mxu0 0.0
        %2447 = vmatmul.mubr.f32.gmra.mrb[0].mxu0 %v2250
        %v2448 = vpop.f32.mrb[0].mxu0
        %v2449 = vadd.f32 0.0, %v2448
        %v2450 = vpop.f32.mrb[0].mxu0
        %2451 = vmatprep.mubr.f32.mxu0 0.0
        %2452 = vmatmul.mubr.f32.gmra.mrb[0].mxu0 %v2253
        %v2453 = vpop.f32.mrb[0].mxu0
        %v2454 = vadd.f32 0.0, %v2453
        %v2455 = vpop.f32.mrb[0].mxu0
        %2456 = vmatprep.mubr.f32.mxu0 0.0
        %2457 = vmatmul.mubr.f32.gmra.mrb[0].mxu0 %v2256
        %v2458 = vpop.f32.mrb[0].mxu0
        %v2459 = vadd.f32 0.0, %v2458
        %v2460 = vpop.f32.mrb[0].mxu0
        %2461 = vmatprep.mubr.f32.mxu0 0.0
        %2462 = vmatmul.mubr.f32.gmra.mrb[0].mxu0 %v2259
        %v2463 = vpop.f32.mrb[0].mxu0
        %v2464 = vadd.f32 0.0, %v2463
        %v2465 = vpop.f32.mrb[0].mxu0
        %2466 = vmatprep.mubr.f32.mxu0 0.0
        %2467 = vmatmul.mubr.f32.gmra.mrb[0].mxu0 %v2262
        %v2468 = vpop.f32.mrb[0].mxu0
        %v2469 = vadd.f32 0.0, %v2468
        %v2470 = vpop.f32.mrb[0].mxu0
        %2471 = vmatprep.mubr.f32.mxu0 0.0
        %2472 = vmatmul.mubr.f32.gmra.mrb[0].mxu0 %v2265
        %v2473 = vpop.f32.mrb[0].mxu0
        %v2474 = vadd.f32 0.0, %v2473
        %v2475 = vpop.f32.mrb[0].mxu0
        %2476 = vmatprep.mubr.f32.mxu0 0.0
        %2477 = vmatmul.mubr.f32.gmra.mrb[0].mxu0 %v2268
        %v2478 = vpop.f32.mrb[0].mxu0
        %v2479 = vadd.f32 0.0, %v2478
        %v2480 = vpop.f32.mrb[0].mxu0
        %2481 = vmatprep.mubr.f32.mxu0 0.0
        %2482 = vmatmul.mubr.f32.gmra.mrb[0].mxu0 %v2271
        %v2483 = vpop.f32.mrb[0].mxu0
        %v2484 = vadd.f32 0.0, %v2483
        %v2485 = vpop.f32.mrb[0].mxu0
        %2486 = vmatprep.mubr.f32.mxu0 0.0
        %2487 = vmatmul.mubr.f32.gmra.mrb[0].mxu0 %v2274
        %v2488 = vpop.f32.mrb[0].mxu0
        %v2489 = vadd.f32 0.0, %v2488
        %v2490 = vpop.f32.mrb[0].mxu0
        %2491 = vmatprep.mubr.f32.mxu0 0.0
        %2492 = vmatmul.mubr.f32.gmra.mrb[0].mxu0 %v2277
        %v2493 = vpop.f32.mrb[0].mxu0
        %v2494 = vadd.f32 0.0, %v2493
        %v2495 = vpop.f32.mrb[0].mxu0
        %2496 = vmatprep.mubr.f32.mxu0 0.0
        %2497 = vmatmul.mubr.f32.gmra.mrb[0].mxu0 %v2280
        %v2498 = vpop.f32.mrb[0].mxu0
        %v2499 = vadd.f32 0.0, %v2498
        %v2500 = vpop.f32.mrb[0].mxu0
        %2501 = vmatprep.mubr.f32.mxu0 0.0
        %2502 = vmatmul.mubr.f32.gmra.mrb[0].mxu0 %v2283
        %v2503 = vpop.f32.mrb[0].mxu0
        %v2504 = vadd.f32 0.0, %v2503
        %v2505 = vpop.f32.mrb[0].mxu0
        %2506 = vmatprep.mubr.f32.mxu0 0.0
        %2507 = vmatmul.mubr.f32.gmra.mrb[0].mxu0 %v2286
        %v2508 = vpop.f32.mrb[0].mxu0
        %v2509 = vadd.f32 0.0, %v2508
        %v2510 = vpop.f32.mrb[0].mxu0
        %2511 = vmatprep.mubr.f32.mxu0 0.0
        %2512 = vmatmul.mubr.f32.gmra.mrb[0].mxu0 %v2289
        %v2513 = vpop.f32.mrb[0].mxu0
        %v2514 = vadd.f32 0.0, %v2513
        %v2515 = vpop.f32.mrb[0].mxu0
        %2516 = vmatprep.mubr.f32.mxu0 0.0
        %2517 = vmatmul.mubr.f32.gmra.mrb[0].mxu0 %v2292
        %v2518 = vpop.f32.mrb[0].mxu0
        %v2519 = vadd.f32 0.0, %v2518
        %v2520 = vpop.f32.mrb[0].mxu0
        %2521 = vdwg.mxu0
        %v2522 = vadd.f32 %v1621, %v2364
        %v2523 = vadd.f32 %v1626, %v2369
        %v2524 = vadd.f32 %v1631, %v2374
        %v2525 = vadd.f32 %v1636, %v2379
        %v2526 = vadd.f32 %v1641, %v2384
        %v2527 = vadd.f32 %v1646, %v2389
        %v2528 = vadd.f32 %v1651, %v2394
        %v2529 = vadd.f32 %v1656, %v2399
        %v2530 = vadd.f32 %v1661, %v2404
        %v2531 = vadd.f32 %v1666, %v2409
        %v2532 = vadd.f32 %v1671, %v2414
        %v2533 = vadd.f32 %v1676, %v2419
        %v2534 = vadd.f32 %v1681, %v2424
        %v2535 = vadd.f32 %v1686, %v2429
        %v2536 = vadd.f32 %v1691, %v2434
        %v2537 = vadd.f32 %v1696, %v2439
        %v2538 = vadd.f32 %v1701, %v2444
        %v2539 = vadd.f32 %v1706, %v2449
        %v2540 = vadd.f32 %v1711, %v2454
        %v2541 = vadd.f32 %v1716, %v2459
        %v2542 = vadd.f32 %v1721, %v2464
        %v2543 = vadd.f32 %v1726, %v2469
        %v2544 = vadd.f32 %v1731, %v2474
        %v2545 = vadd.f32 %v1736, %v2479
        %v2546 = vadd.f32 %v1741, %v2484
        %v2547 = vadd.f32 %v1746, %v2489
        %v2548 = vadd.f32 %v1751, %v2494
        %v2549 = vadd.f32 %v1756, %v2499
        %v2550 = vadd.f32 %v1761, %v2504
        %v2551 = vadd.f32 %v1766, %v2509
        %v2552 = vadd.f32 %v1771, %v2514
        %v2553 = vadd.f32 %v1776, %v2519
        %2554 = vst.msk [vmem:[%s181] sm:$0xff] %vm214, %v2522
        %2555 = vst.msk [vmem:[%s181 + $0x8] sm:$0xff] %vm214, %v2523
        %2556 = vst.msk [vmem:[%s181 + $0x10] sm:$0xff] %vm214, %v2524
        %2557 = vst.msk [vmem:[%s181 + $0x18] sm:$0xff] %vm214, %v2525
        %2558 = vst.msk [vmem:[%s181 + $0x20] sm:$0xff] %vm214, %v2526
        %2559 = vst.msk [vmem:[%s181 + $0x28] sm:$0xff] %vm214, %v2527
        %2560 = vst.msk [vmem:[%s181 + $0x30] sm:$0xff] %vm214, %v2528
        %2561 = vst.msk [vmem:[%s181 + $0x38] sm:$0xff] %vm214, %v2529
        %2562 = vst.msk [vmem:[%s181 + $0x40] sm:$0xff] %vm214, %v2530
        %2563 = vst.msk [vmem:[%s181 + $0x48] sm:$0xff] %vm214, %v2531
        %2564 = vst.msk [vmem:[%s181 + $0x50] sm:$0xff] %vm214, %v2532
        %2565 = vst.msk [vmem:[%s181 + $0x58] sm:$0xff] %vm214, %v2533
        %2566 = vst.msk [vmem:[%s181 + $0x60] sm:$0xff] %vm214, %v2534
        %2567 = vst.msk [vmem:[%s181 + $0x68] sm:$0xff] %vm214, %v2535
        %2568 = vst.msk [vmem:[%s181 + $0x70] sm:$0xff] %vm214, %v2536
        %2569 = vst.msk [vmem:[%s181 + $0x78] sm:$0xff] %vm214, %v2537
        %2570 = vst.msk [vmem:[%s181 + $0x80] sm:$0xff] %vm214, %v2538
        %2571 = vst.msk [vmem:[%s181 + $0x88] sm:$0xff] %vm214, %v2539
        %2572 = vst.msk [vmem:[%s181 + $0x90] sm:$0xff] %vm214, %v2540
        %2573 = vst.msk [vmem:[%s181 + $0x98] sm:$0xff] %vm214, %v2541
        %2574 = vst.msk [vmem:[%s181 + $0xa0] sm:$0xff] %vm214, %v2542
        %2575 = vst.msk [vmem:[%s181 + $0xa8] sm:$0xff] %vm214, %v2543
        %2576 = vst.msk [vmem:[%s181 + $0xb0] sm:$0xff] %vm214, %v2544
        %2577 = vst.msk [vmem:[%s181 + $0xb8] sm:$0xff] %vm214, %v2545
        %2578 = vst.msk [vmem:[%s181 + $0xc0] sm:$0xff] %vm214, %v2546
        %2579 = vst.msk [vmem:[%s181 + $0xc8] sm:$0xff] %vm214, %v2547
        %2580 = vst.msk [vmem:[%s181 + $0xd0] sm:$0xff] %vm214, %v2548
        %2581 = vst.msk [vmem:[%s181 + $0xd8] sm:$0xff] %vm214, %v2549
        %2582 = vst.msk [vmem:[%s181 + $0xe0] sm:$0xff] %vm214, %v2550
        %2583 = vst.msk [vmem:[%s181 + $0xe8] sm:$0xff] %vm214, %v2551
        %2584 = vst.msk [vmem:[%s181 + $0xf0] sm:$0xff] %vm214, %v2552
        %2585 = vst.msk [vmem:[%s181 + $0xf8] sm:$0xff] %vm214, %v2553
        %2586 = vmatprep.subr.mxu0 0.0
        %2587 = vmatpush1.msra.mxu0 %v2522
        %2588 = vmatprep.subr.mxu0 0.0
        %2589 = vmatpush1.msra.mxu0 %v2523
        %2590 = vmatprep.subr.mxu0 0.0
        %2591 = vmatpush1.msra.mxu0 %v2524
        %2592 = vmatprep.subr.mxu0 0.0
        %2593 = vmatpush1.msra.mxu0 %v2525
        %2594 = vmatprep.subr.mxu0 0.0
        %2595 = vmatpush1.msra.mxu0 %v2526
        %2596 = vmatprep.subr.mxu0 0.0
        %2597 = vmatpush1.msra.mxu0 %v2527
        %2598 = vmatprep.subr.mxu0 0.0
        %2599 = vmatpush1.msra.mxu0 %v2528
        %2600 = vmatprep.subr.mxu0 0.0
        %2601 = vmatpush1.msra.mxu0 %v2529
        %2602 = vmatprep.subr.mxu0 0.0
        %2603 = vmatpush1.msra.mxu0 %v2530
        %2604 = vmatprep.subr.mxu0 0.0
        %2605 = vmatpush1.msra.mxu0 %v2531
        %2606 = vmatprep.subr.mxu0 0.0
        %2607 = vmatpush1.msra.mxu0 %v2532
        %2608 = vmatprep.subr.mxu0 0.0
        %2609 = vmatpush1.msra.mxu0 %v2533
        %2610 = vmatprep.subr.mxu0 0.0
        %2611 = vmatpush1.msra.mxu0 %v2534
        %2612 = vmatprep.subr.mxu0 0.0
        %2613 = vmatpush1.msra.mxu0 %v2535
        %2614 = vmatprep.subr.mxu0 0.0
        %2615 = vmatpush1.msra.mxu0 %v2536
        %2616 = vmatprep.subr.mxu0 0.0
        %2617 = vmatpush1.msra.mxu0 %v2537
        %2618 = vmatprep.subr.mxu0 0.0
        %2619 = vmatpush1.msra.mxu0 %v2538
        %2620 = vmatprep.subr.mxu0 0.0
        %2621 = vmatpush1.msra.mxu0 %v2539
        %2622 = vmatprep.subr.mxu0 0.0
        %2623 = vmatpush1.msra.mxu0 %v2540
        %2624 = vmatprep.subr.mxu0 0.0
        %2625 = vmatpush1.msra.mxu0 %v2541
        %2626 = vmatprep.subr.mxu0 0.0
        %2627 = vmatpush1.msra.mxu0 %v2542
        %2628 = vmatprep.subr.mxu0 0.0
        %2629 = vmatpush1.msra.mxu0 %v2543
        %2630 = vmatprep.subr.mxu0 0.0
        %2631 = vmatpush1.msra.mxu0 %v2544
        %2632 = vmatprep.subr.mxu0 0.0
        %2633 = vmatpush1.msra.mxu0 %v2545
        %2634 = vmatprep.subr.mxu0 0.0
        %2635 = vmatpush1.msra.mxu0 %v2546
        %2636 = vmatprep.subr.mxu0 0.0
        %2637 = vmatpush1.msra.mxu0 %v2547
        %2638 = vmatprep.subr.mxu0 0.0
        %2639 = vmatpush1.msra.mxu0 %v2548
        %2640 = vmatprep.subr.mxu0 0.0
        %2641 = vmatpush1.msra.mxu0 %v2549
        %2642 = vmatprep.subr.mxu0 0.0
        %2643 = vmatpush1.msra.mxu0 %v2550
        %2644 = vmatprep.subr.mxu0 0.0
        %2645 = vmatpush1.msra.mxu0 %v2551
        %2646 = vmatprep.subr.mxu0 0.0
        %2647 = vmatpush1.msra.mxu0 %v2552
        %2648 = vmatprep.subr.mxu0 0.0
        %2649 = vmatpush1.msra.mxu0 %v2553
        %2650 = vmatprep.mubr.f32.mxu0 1.0
        %2651 = vmatmul.mubr.f32.gmra.mrb[0].mxu0 1.0
        %v2652 = vpop.f32.mrb[0].mxu0
        %v2653 = vadd.f32 0.0, %v2652
        %v2654 = vpop.f32.mrb[0].mxu0
        %2655 = vdwg.mxu0
        %v2656 = vmul.f32 %v2522, %v2522
        %v2657 = vmul.f32 %v2523, %v2523
        %v2658 = vmul.f32 %v2524, %v2524
        %v2659 = vmul.f32 %v2525, %v2525
        %v2660 = vmul.f32 %v2526, %v2526
        %v2661 = vmul.f32 %v2527, %v2527
        %v2662 = vmul.f32 %v2528, %v2528
        %v2663 = vmul.f32 %v2529, %v2529
        %v2664 = vmul.f32 %v2530, %v2530
        %v2665 = vmul.f32 %v2531, %v2531
        %v2666 = vmul.f32 %v2532, %v2532
        %v2667 = vmul.f32 %v2533, %v2533
        %v2668 = vmul.f32 %v2534, %v2534
        %v2669 = vmul.f32 %v2535, %v2535
        %v2670 = vmul.f32 %v2536, %v2536
        %v2671 = vmul.f32 %v2537, %v2537
        %v2672 = vmul.f32 %v2538, %v2538
        %v2673 = vmul.f32 %v2539, %v2539
        %v2674 = vmul.f32 %v2540, %v2540
        %v2675 = vmul.f32 %v2541, %v2541
        %v2676 = vmul.f32 %v2542, %v2542
        %v2677 = vmul.f32 %v2543, %v2543
        %v2678 = vmul.f32 %v2544, %v2544
        %v2679 = vmul.f32 %v2545, %v2545
        %v2680 = vmul.f32 %v2546, %v2546
        %v2681 = vmul.f32 %v2547, %v2547
        %v2682 = vmul.f32 %v2548, %v2548
        %v2683 = vmul.f32 %v2549, %v2549
        %v2684 = vmul.f32 %v2550, %v2550
        %v2685 = vmul.f32 %v2551, %v2551
        %v2686 = vmul.f32 %v2552, %v2552
        %v2687 = vmul.f32 %v2553, %v2553
        %2688 = vmatprep.subr.mxu0 0.0
        %2689 = vmatpush1.msra.mxu0 %v2656
        %2690 = vmatprep.subr.mxu0 0.0
        %2691 = vmatpush1.msra.mxu0 %v2657
        %2692 = vmatprep.subr.mxu0 0.0
        %2693 = vmatpush1.msra.mxu0 %v2658
        %2694 = vmatprep.subr.mxu0 0.0
        %2695 = vmatpush1.msra.mxu0 %v2659
        %2696 = vmatprep.subr.mxu0 0.0
        %2697 = vmatpush1.msra.mxu0 %v2660
        %2698 = vmatprep.subr.mxu0 0.0
        %2699 = vmatpush1.msra.mxu0 %v2661
        %2700 = vmatprep.subr.mxu0 0.0
        %2701 = vmatpush1.msra.mxu0 %v2662
        %2702 = vmatprep.subr.mxu0 0.0
        %2703 = vmatpush1.msra.mxu0 %v2663
        %2704 = vmatprep.subr.mxu0 0.0
        %2705 = vmatpush1.msra.mxu0 %v2664
        %2706 = vmatprep.subr.mxu0 0.0
        %2707 = vmatpush1.msra.mxu0 %v2665
        %2708 = vmatprep.subr.mxu0 0.0
        %2709 = vmatpush1.msra.mxu0 %v2666
        %2710 = vmatprep.subr.mxu0 0.0
        %2711 = vmatpush1.msra.mxu0 %v2667
        %2712 = vmatprep.subr.mxu0 0.0
        %2713 = vmatpush1.msra.mxu0 %v2668
        %2714 = vmatprep.subr.mxu0 0.0
        %2715 = vmatpush1.msra.mxu0 %v2669
        %2716 = vmatprep.subr.mxu0 0.0
        %2717 = vmatpush1.msra.mxu0 %v2670
        %2718 = vmatprep.subr.mxu0 0.0
        %2719 = vmatpush1.msra.mxu0 %v2671
        %2720 = vmatprep.subr.mxu0 0.0
        %2721 = vmatpush1.msra.mxu0 %v2672
        %2722 = vmatprep.subr.mxu0 0.0
        %2723 = vmatpush1.msra.mxu0 %v2673
        %2724 = vmatprep.subr.mxu0 0.0
        %2725 = vmatpush1.msra.mxu0 %v2674
        %2726 = vmatprep.subr.mxu0 0.0
        %2727 = vmatpush1.msra.mxu0 %v2675
        %2728 = vmatprep.subr.mxu0 0.0
        %2729 = vmatpush1.msra.mxu0 %v2676
        %2730 = vmatprep.subr.mxu0 0.0
        %2731 = vmatpush1.msra.mxu0 %v2677
        %2732 = vmatprep.subr.mxu0 0.0
        %2733 = vmatpush1.msra.mxu0 %v2678
        %2734 = vmatprep.subr.mxu0 0.0
        %2735 = vmatpush1.msra.mxu0 %v2679
        %2736 = vmatprep.subr.mxu0 0.0
        %2737 = vmatpush1.msra.mxu0 %v2680
        %2738 = vmatprep.subr.mxu0 0.0
        %2739 = vmatpush1.msra.mxu0 %v2681
        %2740 = vmatprep.subr.mxu0 0.0
        %2741 = vmatpush1.msra.mxu0 %v2682
        %2742 = vmatprep.subr.mxu0 0.0
        %2743 = vmatpush1.msra.mxu0 %v2683
        %2744 = vmatprep.subr.mxu0 0.0
        %2745 = vmatpush1.msra.mxu0 %v2684
        %2746 = vmatprep.subr.mxu0 0.0
        %2747 = vmatpush1.msra.mxu0 %v2685
        %2748 = vmatprep.subr.mxu0 0.0
        %2749 = vmatpush1.msra.mxu0 %v2686
        %2750 = vmatprep.subr.mxu0 0.0
        %2751 = vmatpush1.msra.mxu0 %v2687
        %2752 = vmatprep.mubr.f32.mxu0 1.0
        %2753 = vmatmul.mubr.f32.gmra.mrb[0].mxu0 1.0
        %v2754 = vpop.f32.mrb[0].mxu0
        %v2755 = vadd.f32 0.0, %v2754
        %v2756 = vpop.f32.mrb[0].mxu0
        %2757 = vdwg.mxu0
        %v2759 = vrot.slane %v2755, 7
        %vm2761 = vcmask 1040384
        %v2762 = vsel %vm2761, %v2653, %v2759
        %vm2763 = vcmask 25600
        %2764 = vst.msk [vmem:[%s171] sm:$0x3] %vm2763, %v2762
        %p2765 = scmp.lt.s32.totalorder %s18, 1
        %s2766 = scalar_select %p2765, %s18, 1
        %s2767 = smul.addr %s2766, 32
        %s2768 = smul.addr %s2767, 8
        %s2769 = scalar_lea.vmem %s2, %s2768
        %s2770 = sand.u32 %s99, 1
        %s2771 = scalar_lea.sflag [#allocation4], %s2770
        %s2772 = sand.u32 %s99, 1
        %s2773 = smul.addr %s2772, 2
        %s2774 = scalar_lea.vmem [#allocation3], %s2773
        // Predicated region
        $region29: #{tpu_custom_call.1} parent=27 // pred_check
          %p2775 = pneg %p83
        $region30: #{tpu_custom_call.1} parent=27 // pred_check_branch
          %2777 = sbr.rel (%p2775) target = $region32
        $region31: #{tpu_custom_call.1} parent=27 // pred_region
          _
        $region32: #{tpu_custom_call.1} parent=27 // pred_fallthru
          _
        // Predicated region
        $region33: #{tpu_custom_call.1} parent=27 // pred_check
          %p2778 = pneg %p109
        $region34: #{tpu_custom_call.1} parent=27 // pred_check_branch
          %2780 = sbr.rel (%p2778) target = $region36
        $region35: #{tpu_custom_call.1} parent=27 // pred_region
          %s2782 = ssub.s32 32, 32
          %2783 = vsyncadd %s2771, %s2782
          %s2784 = smul.addr %s18, 32
          %s2785 = scalar_lea.hbm %s3, %s2784
          %s2787 = sshll.u32 %s2774, 4
          %s2788 = int_to_ptr.vmem [resolvable:$true] %s2787
          %2790 = dma.vmem_to_hbm [thread:$0]  %s2788, 32, %s2785, %s2771
        $region36: #{tpu_custom_call.1} parent=27 // pred_fallthru
          _
      $region28: #{tpu_custom_call.1} parent=5 // pred_fallthru
        _
      %p2791 = scmp.le.s32.totalorder 2, %s13
      // Predicated region
      $region37: #{tpu_custom_call.1} parent=5 // pred_check
        %p2792 = pneg %p2791
      $region38: #{tpu_custom_call.1} parent=5 // pred_check_branch
        %2794 = sbr.rel (%p2792) target = $region40
      $region39: #{tpu_custom_call.1} parent=5 // pred_region
        %s2795 = ssub.s32 %s13, 2
        // Predicated region
        $region41: #{tpu_custom_call.1} parent=39 // pred_check
          %p2796 = pneg %p89
        $region42: #{tpu_custom_call.1} parent=39 // pred_check_branch
          %2798 = sbr.rel (%p2796) target = $region44
        $region43: #{tpu_custom_call.1} parent=39 // pred_region
          %p2799 = scmp.lt.s32.totalorder %s19, 1
          %s2800 = scalar_select %p2799, %s19, 1
          %s2801 = smul.addr %s2800, 32
          %s2802 = smul.addr %s2801, 8
          %s2803 = scalar_lea.vmem %s2, %s2802
        $region44: #{tpu_custom_call.1} parent=39 // pred_fallthru
          _
        // Predicated region
        $region45: #{tpu_custom_call.1} parent=39 // pred_check
          %p2804 = pneg %p115
        $region46: #{tpu_custom_call.1} parent=39 // pred_check_branch
          %2806 = sbr.rel (%p2804) target = $region48
        $region47: #{tpu_custom_call.1} parent=39 // pred_region
          %s2807 = sand.u32 %s100, 1
          %s2808 = scalar_lea.sflag [#allocation4], %s2807
          %s2809 = sand.u32 %s100, 1
          %s2810 = smul.addr %s2809, 2
          %s2811 = scalar_lea.vmem [#allocation3], %s2810
          %2812 = dma.done %s2808, 32
        $region48: #{tpu_custom_call.1} parent=39 // pred_fallthru
          _
      $region40: #{tpu_custom_call.1} parent=5 // pred_fallthru
        _
    $region6: #{tpu_custom_call.1} parent=1 // loop_footer
      %s17 = sadd.s32 1, %s13
    $region7: #{tpu_custom_call.1} parent=1 // loop_footer_branch
      %12 = sbr.rel target = $region3
    $region8: #{tpu_custom_call.1} parent=1 // loop_exit
      _
    %2813 = vsyncpa [#allocation4], 1
    %s2814 = scalar_lea.sflag [#allocation4], 1
    %2815 = vsyncpa %s2814, 1

</llo_original>
